<compile_context>
chip_gen: v7x
topology: tpu7x:2x2x1
jax: 0.10.0
libtpu: 0.0.40
codegen_flags: <defaults>
</compile_context>

<pallas_src>
import functools

import jax
import jax.numpy as jnp
from jax.experimental import pallas as pl
from jax.experimental.pallas import tpu as pltpu

# ---- re-wired (self-consistent) model dimensions ----------------------------
B = 2                     # batch
BP = 8                    # batch padded to a full fp32 sublane tile
N = 8                     # "sequence" axis (stand-in for 5408)
C = 6                     # feature axis (same 6 as LayerNorm / Linear(6, 8))
BN = B * N                # merged (batch * seq) rows for the linear chain
H1 = 128                  # layers1 hidden width
D_OUT = 10                # final feature width
DP = 128                  # D_OUT zero-padded to a full lane tile
D3, D4, D5, D6, D7, D8 = 64, 8, 64, 128, 384, 48
ND = N * D_OUT            # layers9 "block-expanded" width
LN_EPS = 1e-5

# ---- bf16 weight-slab row bands (starts are multiples of 16 for bf16 packing)
W1A_R0 = 0                          # (N*C, H1)        rows [0, 48)
W1B_R0 = W1A_R0 + N * C             # (H1, DP)         rows [48, 176)
W36_R0 = W1B_R0 + H1                # (C, D6)          rows [176, 182)
W7_R0 = W36_R0 + 16                 # 3 x (D6, 128)    rows [192, 576)
W8_R0 = W7_R0 + 3 * D6              # (D7, D8)         rows [576, 960)
W9_R0 = W8_R0 + D7                  # (D8, ND)         rows [960, 1008)
W_ROWS = W9_R0 + D8                 # 1008

# ---- f32 slab row bands ------------------------------------------------------
F_B36R = 0                          # (BN, D6)  folded layers3..6 per-row bias
F_M9 = F_B36R + BN                  # (BN, ND)  layers9 row mask
F_LNW = F_M9 + BN                   # (BN, C)   LayerNorm scale (tiled)
F_E = F_LNW + BN                    # (BN, BP)  sample-membership (stat bcast)
F_SEL = F_E + BN                    # (BP, BN)  sample row-fold
F_R9 = F_SEL + BP                   # (ND, DP)  layers9 block-fold
F_BIAS = F_R9 + ND                  # 8 bias rows (b1a, b7 x3, b8, b1b_p, b9_p)
F_ROWS = F_BIAS + 8                 # 160


def model_kernel(xflat_ref, xrows_ref, w_ref, f_ref, out_ref):
    bf16 = jnp.bfloat16
    relu = lambda t: jnp.maximum(t, 0.0)
    dot = functools.partial(jnp.dot, preferred_element_type=jnp.float32)

    # layers1's in-place ReLU mutates x3 before every consumer sees it.
    xf = relu(xflat_ref[...])                           # (BP, N*C) f32 (rows>=B are 0)
    xr = relu(xrows_ref[...])                           # (BN, C)   f32

    # ---- layers1: Flatten -> Linear(N*C, H1) -> ReLU -> Linear(H1, D_OUT[pad])
    w1a = w_ref[W1A_R0:W1A_R0 + N * C, :]               # (48, 128) bf16
    w1b = w_ref[W1B_R0:W1B_R0 + H1, :]                  # (128, 128) bf16 (cols>=10 zero)
    b1a = f_ref[F_BIAS + 0:F_BIAS + 1, :]
    b1bp = f_ref[F_BIAS + 5:F_BIAS + 6, :]
    h = relu(dot(xf.astype(bf16), w1a) + b1a)           # (BP, H1) f32
    p1 = dot(h.astype(bf16), w1b) + b1bp                # (BP, DP) f32

    # ---- layers2: LayerNorm over the trailing (N, C) dims; one-pass stats and
    # a single (BN, BP)x(BP, 2) matmul broadcasting [mean | E[x^2]] per row.
    inv = 1.0 / float(N * C)
    mean = jnp.sum(xf, axis=-1, keepdims=True) * inv     # (BP, 1)
    msq = jnp.sum(xf * xf, axis=-1, keepdims=True) * inv  # (BP, 1)
    col = jax.lax.broadcasted_iota(jnp.int32, (BP, 2), 1)
    stats = jnp.where(col == 0, mean, msq)                # (BP, 2) == concat([mean, msq])
    e_mat = f_ref[F_E:F_E + BN, 0:BP]                     # (BN, BP) f32 0/1
    stats_r = dot(e_mat, stats)                           # (BN, 2)
    mean_r = stats_r[:, 0:1]
    rstd_r = jax.lax.rsqrt(stats_r[:, 1:2] - mean_r * mean_r + LN_EPS)
    lnw_r = f_ref[F_LNW:F_LNW + BN, 0:C]
    # LN shift is folded into b36_row (added after the layers3..6 folded matmul).
    p2 = (xr - mean_r) * (rstd_r * lnw_r)                 # (BN, C)

    # ---- layers3..6 folded into one Linear (host-folded, incl. LN shift) ----
    w36 = w_ref[W36_R0:W36_R0 + C, :]
    b36_r = f_ref[F_B36R:F_B36R + BN, :]
    o3 = dot(p2.astype(bf16), w36) + b36_r                # (BN, D6)

    # ---- layers7: ReLU -> Linear(D6, D7); weight stored as 3 column blocks --
    a4 = relu(o3).astype(bf16)
    blocks = []
    for k in range(3):
        wk = w_ref[W7_R0 + k * D6:W7_R0 + (k + 1) * D6, :]
        bk = f_ref[F_BIAS + 1 + k:F_BIAS + 2 + k, :]
        blocks.append(dot(a4, wk) + bk)
    o4 = jnp.concatenate(blocks, axis=-1)                 # (BN, D7) f32

    # ---- layers8: ReLU -> Linear(D7, D8) -------------------------------------
    w8 = w_ref[W8_R0:W8_R0 + D7, 0:D8]
    b8 = f_ref[F_BIAS + 4:F_BIAS + 5, 0:D8]
    o5 = dot(relu(o4).astype(bf16), w8) + b8              # (BN, D8)

    # ---- layers9: Flatten -> ReLU -> Linear(N*D8, D_OUT) -> ReLU, with no
    # in-kernel reshape: per-row partials against every position's weight block
    # (w9cat), mask each row to its own block (m9), sum rows of each sample
    # (sel), fold the N column blocks into one padded 128-lane block (r9).
    w9c = w_ref[W9_R0:W9_R0 + D8, 0:ND]
    m9 = f_ref[F_M9:F_M9 + BN, 0:ND]
    sel = f_ref[F_SEL:F_SEL + BP, 0:BN]
    r9 = f_ref[F_R9:F_R9 + ND, :]
    b9p = f_ref[F_BIAS + 6:F_BIAS + 7, :]
    t = dot(relu(o5).astype(bf16), w9c) * m9              # (BN, ND) f32
    q = dot(dot(sel, t), r9) + b9p                        # (BP, DP) f32

    out_ref[...] = relu(q) + p1                           # full (8, 128) tile store


def prepare_inputs(params):
    """Host-side folding / packing of the model parameters (done once)."""
    (lnw, lnb, w1a, b1a, w1b, b1b, w3, b3, w4, b4, w5, b5,
     w6, b6, w7, b7, w8, b8, w9, b9) = params
    f32, bf16 = jnp.float32, jnp.bfloat16

    # Fold the ReLU-free linear chain layers3 -> layers6 into one affine map,
    # and fold the LayerNorm shift through it as a per-row bias.
    w36 = w3 @ w4 @ w5 @ w6                                   # (C, D6)
    b36 = ((b3 @ w4 + b4) @ w5 + b5) @ w6 + b6                # (1, D6)
    lnw_rows = jnp.tile(lnw, (B, 1))                          # (BN, C)
    b36_row = jnp.tile(lnb, (B, 1)) @ w36 + b36               # (BN, D6)

    # layers1 flatten weight; 10-wide heads zero-padded to 128 lanes.
    w1a_flat = w1a.reshape(N * C, H1)
    w1b_p = jnp.zeros((H1, DP), f32).at[:, :D_OUT].set(w1b)
    b1b_p = jnp.zeros((1, DP), f32).at[:, :D_OUT].set(b1b)
    b9_p = jnp.zeros((1, DP), f32).at[:, :D_OUT].set(b9)

    # layers9 weight laid out as (D8, N*D_OUT): column block n holds w9[n].
    w9cat = jnp.transpose(w9, (1, 0, 2)).reshape(D8, ND)

    # 0/1 bookkeeping matrices (sample membership / row mask / block fold).
    r = jnp.arange(BN)
    e_mat = (r[:, None] // N == jnp.arange(BP)[None, :]).astype(f32)        # (BN, BP)
    sel = (jnp.arange(BP)[:, None] == r[None, :] // N).astype(f32)          # (BP, BN)
    m9 = (jnp.arange(ND)[None, :] // D_OUT == (r[:, None] % N)).astype(f32)  # (BN, ND)
    r9 = (jnp.arange(ND)[:, None] % D_OUT == jnp.arange(DP)[None, :]).astype(f32)  # (ND, DP)

    # ---- single bf16 weight slab (all parameter dot operands), width 128 ----
    wslab = jnp.zeros((W_ROWS, 128), f32)
    wslab = wslab.at[W1A_R0:W1A_R0 + N * C, :].set(w1a_flat)
    wslab = wslab.at[W1B_R0:W1B_R0 + H1, :].set(w1b_p)
    wslab = wslab.at[W36_R0:W36_R0 + C, :].set(w36)
    for k in range(3):
        wslab = wslab.at[W7_R0 + k * D6:W7_R0 + (k + 1) * D6, :].set(
            w7[:, k * 128:(k + 1) * 128])
    wslab = wslab.at[W8_R0:W8_R0 + D7, 0:D8].set(w8)
    wslab = wslab.at[W9_R0:W9_R0 + D8, 0:ND].set(w9cat)
    wslab = wslab.astype(bf16)                                # ~0.25 MB

    # ---- single f32 slab (biases / LN scale / masks / fold matrices) --------
    fslab = jnp.zeros((F_ROWS, 128), f32)
    fslab = fslab.at[F_B36R:F_B36R + BN, :].set(b36_row)
    fslab = fslab.at[F_M9:F_M9 + BN, 0:ND].set(m9)
    fslab = fslab.at[F_LNW:F_LNW + BN, 0:C].set(lnw_rows)
    fslab = fslab.at[F_E:F_E + BN, 0:BP].set(e_mat)
    fslab = fslab.at[F_SEL:F_SEL + BP, 0:BN].set(sel)
    fslab = fslab.at[F_R9:F_R9 + ND, :].set(r9)
    fslab = fslab.at[F_BIAS + 0, :].set(b1a[0])
    for k in range(3):
        fslab = fslab.at[F_BIAS + 1 + k, :].set(b7[0, k * 128:(k + 1) * 128])
    fslab = fslab.at[F_BIAS + 4, 0:D8].set(b8[0])
    fslab = fslab.at[F_BIAS + 5, :].set(b1b_p[0])
    fslab = fslab.at[F_BIAS + 6, :].set(b9_p[0])

    return wslab, fslab


@jax.jit
def run_model(x, wslab, fslab):
    f32 = jnp.float32
    # Pad the batch rows to a full sublane tile so the kernel's output store is
    # a full (8, 128) tile; reshapes/pads here are trivial XLA ops.
    xflat = jnp.zeros((BP, N * C), f32).at[:B, :].set(x.reshape(B, N * C))
    xrows = x.reshape(BN, C)

    vmem = pl.BlockSpec(memory_space=pltpu.MemorySpace.VMEM)
    out = pl.pallas_call(
        model_kernel,
        out_shape=jax.ShapeDtypeStruct((BP, DP), jnp.float32),
        in_specs=[vmem, vmem, vmem, vmem],   # whole arrays VMEM-resident, 1 step
        out_specs=vmem,
    )(xflat, xrows, wslab, fslab)
    return out[:B, :D_OUT]


def reference(x, params):
    (lnw, lnb, w1a, b1a, w1b, b1b, w3, b3, w4, b4, w5, b5,
     w6, b6, w7, b7, w8, b8, w9, b9) = params
    relu = lambda t: jnp.maximum(t, 0.0)
    xr = relu(x)                                           # in-place ReLU of layers1
    h = relu(xr.reshape(B, N * C) @ w1a.reshape(N * C, H1) + b1a[0])
    p1 = h @ w1b + b1b[0]
    xf = xr.reshape(B, N * C)
    mean = xf.mean(-1, keepdims=True)
    var = ((xf - mean) ** 2).mean(-1, keepdims=True)
    p2 = ((xf - mean) / jnp.sqrt(var + LN_EPS)).reshape(B, N, C) * lnw + lnb
    p3 = p2 @ w3 + b3[0]
    o1 = p3 @ w4 + b4[0]
    o2 = o1 @ w5 + b5[0]
    o3 = o2 @ w6 + b6[0]
    o4 = relu(o3) @ w7 + b7[0]
    o5 = relu(o4) @ w8 + b8[0]
    q1 = relu(relu(o5).reshape(B, N * D8) @ w9.reshape(N * D8, D_OUT) + b9[0])
    return q1 + p1


if __name__ == "__main__":
    keys = iter(jax.random.split(jax.random.PRNGKey(0), 32))
    f32 = jnp.float32

    def weight(shape, fan_in):
        return (jax.random.normal(next(keys), shape, f32)
                / jnp.sqrt(float(fan_in))).astype(f32)

    def bias_init(shape):
        return (0.01 * jax.random.normal(next(keys), shape, f32)).astype(f32)

    x = jax.random.normal(next(keys), (B, N, C), f32)

    lnw = (1.0 + 0.01 * jax.random.normal(next(keys), (N, C), f32)).astype(f32)
    lnb = bias_init((N, C))
    w1a = weight((N, C, H1), N * C); b1a = bias_init((1, H1))
    w1b = weight((H1, D_OUT), H1);   b1b = bias_init((1, D_OUT))
    w3 = weight((C, D3), C);         b3 = bias_init((1, D3))
    w4 = weight((D3, D4), D3);       b4 = bias_init((1, D4))
    w5 = weight((D4, D5), D4);       b5 = bias_init((1, D5))
    w6 = weight((D5, D6), D5);       b6 = bias_init((1, D6))
    w7 = weight((D6, D7), D6);       b7 = bias_init((1, D7))
    w8 = weight((D7, D8), D7);       b8 = bias_init((1, D8))
    w9 = weight((N, D8, D_OUT), N * D8); b9 = bias_init((1, D_OUT))

    params = (lnw, lnb, w1a, b1a, w1b, b1b, w3, b3, w4, b4, w5, b5,
              w6, b6, w7, b7, w8, b8, w9, b9)

    wslab, fslab = prepare_inputs(params)
    out = jax.block_until_ready(run_model(x, wslab, fslab))
    ref = reference(x, params)
    assert out.shape == (B, D_OUT), out.shape
    # bf16 matmul operands (f32 accumulation) vs. the pure-f32 reference:
    # relaxed tolerance; a wiring bug would show up as an O(1) discrepancy.
    err = float(jnp.max(jnp.abs(out - ref)))
    if err > 5e-2:
        raise SystemExit(f"mismatch vs reference: max abs err = {err}")
    print("KERNEL_OK")
</pallas_src>

<mosaic_0001>
module attributes {stable_mosaic.version = 11 : i64} {
  func.func @model_kernel(%arg0: memref<8x48xf32, #tpu.memory_space<vmem>>, %arg1: memref<16x6xf32, #tpu.memory_space<vmem>>, %arg2: memref<1008x128xbf16, #tpu.memory_space<vmem>>, %arg3: memref<160x128xf32, #tpu.memory_space<vmem>>, %arg4: memref<8x128xf32, #tpu.memory_space<vmem>>) attributes {dimension_semantics = [], scalar_prefetch = 0 : i64, scratch_operands = 0 : i64, tpu.core_type = #tpu.core_type<tc>} {
    %c0 = arith.constant 0 : index
    %c0_0 = arith.constant 0 : index
    %0 = vector.load %arg0[%c0, %c0_0] : memref<8x48xf32, #tpu.memory_space<vmem>>, vector<8x48xf32>
    %cst = arith.constant 0.000000e+00 : f32
    %1 = vector.broadcast %cst : f32 to vector<8x48xf32>
    %2 = arith.maximumf %0, %1 : vector<8x48xf32>
    %c0_1 = arith.constant 0 : index
    %c0_2 = arith.constant 0 : index
    %3 = vector.load %arg1[%c0_1, %c0_2] : memref<16x6xf32, #tpu.memory_space<vmem>>, vector<16x6xf32>
    %cst_3 = arith.constant 0.000000e+00 : f32
    %4 = vector.broadcast %cst_3 : f32 to vector<16x6xf32>
    %5 = arith.maximumf %3, %4 : vector<16x6xf32>
    %c0_4 = arith.constant 0 : index
    %c0_5 = arith.constant 0 : index
    %6 = vector.load %arg2[%c0_4, %c0_5] : memref<1008x128xbf16, #tpu.memory_space<vmem>>, vector<48x128xbf16>
    %c48 = arith.constant 48 : index
    %c0_6 = arith.constant 0 : index
    %7 = vector.load %arg2[%c48, %c0_6] : memref<1008x128xbf16, #tpu.memory_space<vmem>>, vector<128x128xbf16>
    %c152 = arith.constant 152 : index
    %c0_7 = arith.constant 0 : index
    %8 = vector.load %arg3[%c152, %c0_7] : memref<160x128xf32, #tpu.memory_space<vmem>>, vector<1x128xf32>
    %c157 = arith.constant 157 : index
    %c0_8 = arith.constant 0 : index
    %9 = vector.load %arg3[%c157, %c0_8] : memref<160x128xf32, #tpu.memory_space<vmem>>, vector<1x128xf32>
    %10 = arith.truncf %2 : vector<8x48xf32> to vector<8x48xbf16>
    %cst_9 = arith.constant dense<0.000000e+00> : vector<8x128xf32>
    %11 = tpu.matmul %10, %6, %cst_9 {dimension_numbers = #tpu.dot_dimension_numbers<[1], [0], [0], [1], [0, 0, 1, 1], [], []>} : vector<8x48xbf16>, vector<48x128xbf16>, vector<8x128xf32> -> vector<8x128xf32>
    %12 = vector.broadcast %8 : vector<1x128xf32> to vector<8x128xf32>
    %13 = arith.addf %11, %12 : vector<8x128xf32>
    %cst_10 = arith.constant 0.000000e+00 : f32
    %14 = vector.broadcast %cst_10 : f32 to vector<8x128xf32>
    %15 = arith.maximumf %13, %14 : vector<8x128xf32>
    %16 = arith.truncf %15 : vector<8x128xf32> to vector<8x128xbf16>
    %cst_11 = arith.constant dense<0.000000e+00> : vector<8x128xf32>
    %17 = tpu.matmul %16, %7, %cst_11 {dimension_numbers = #tpu.dot_dimension_numbers<[1], [0], [0], [1], [0, 0, 1, 1], [], []>} : vector<8x128xbf16>, vector<128x128xbf16>, vector<8x128xf32> -> vector<8x128xf32>
    %18 = vector.broadcast %9 : vector<1x128xf32> to vector<8x128xf32>
    %19 = arith.addf %17, %18 : vector<8x128xf32>
    %cst_12 = arith.constant dense<0.000000e+00> : vector<8xf32>
    %20 = vector.multi_reduction <add>, %2, %cst_12 [1] : vector<8x48xf32> to vector<8xf32>
    %21 = vector.shape_cast %20 : vector<8xf32> to vector<8x1xf32>
    %cst_13 = arith.constant 0.020833334 : f32
    %22 = vector.broadcast %cst_13 : f32 to vector<8x1xf32>
    %23 = arith.mulf %21, %22 : vector<8x1xf32>
    %24 = arith.mulf %2, %2 : vector<8x48xf32>
    %cst_14 = arith.constant dense<0.000000e+00> : vector<8xf32>
    %25 = vector.multi_reduction <add>, %24, %cst_14 [1] : vector<8x48xf32> to vector<8xf32>
    %26 = vector.shape_cast %25 : vector<8xf32> to vector<8x1xf32>
    %cst_15 = arith.constant 0.020833334 : f32
    %27 = vector.broadcast %cst_15 : f32 to vector<8x1xf32>
    %28 = arith.mulf %26, %27 : vector<8x1xf32>
    %29 = tpu.iota {dimensions = array<i32: 1>} : vector<8x2xi32>
    %c0_i32 = arith.constant 0 : i32
    %30 = vector.broadcast %c0_i32 : i32 to vector<8x2xi32>
    %31 = arith.cmpi eq, %29, %30 : vector<8x2xi32>
    %32 = vector.shape_cast %23 : vector<8x1xf32> to vector<8x1xf32>
    %33 = vector.broadcast %32 : vector<8x1xf32> to vector<8x2xf32>
    %34 = vector.shape_cast %28 : vector<8x1xf32> to vector<8x1xf32>
    %35 = vector.broadcast %34 : vector<8x1xf32> to vector<8x2xf32>
    %36 = arith.select %31, %33, %35 : vector<8x2xi1>, vector<8x2xf32>
    %c48_16 = arith.constant 48 : index
    %c0_17 = arith.constant 0 : index
    %37 = vector.load %arg3[%c48_16, %c0_17] : memref<160x128xf32, #tpu.memory_space<vmem>>, vector<16x8xf32>
    %cst_18 = arith.constant dense<0.000000e+00> : vector<16x2xf32>
    %38 = tpu.matmul %37, %36, %cst_18 {dimension_numbers = #tpu.dot_dimension_numbers<[1], [0], [0], [1], [0, 0, 1, 1], [], []>} : vector<16x8xf32>, vector<8x2xf32>, vector<16x2xf32> -> vector<16x2xf32>
    %39 = vector.extract_strided_slice %38 {offsets = [0, 0], sizes = [16, 1], strides = [1, 1]} : vector<16x2xf32> to vector<16x1xf32>
    %40 = vector.extract_strided_slice %38 {offsets = [0, 1], sizes = [16, 1], strides = [1, 1]} : vector<16x2xf32> to vector<16x1xf32>
    %41 = arith.mulf %39, %39 : vector<16x1xf32>
    %42 = arith.subf %40, %41 : vector<16x1xf32>
    %cst_19 = arith.constant 9.99999974E-6 : f32
    %43 = vector.broadcast %cst_19 : f32 to vector<16x1xf32>
    %44 = arith.addf %42, %43 : vector<16x1xf32>
    %45 = math.rsqrt %44 : vector<16x1xf32>
    %c32 = arith.constant 32 : index
    %c0_20 = arith.constant 0 : index
    %46 = vector.load %arg3[%c32, %c0_20] : memref<160x128xf32, #tpu.memory_space<vmem>>, vector<16x6xf32>
    %47 = vector.broadcast %39 : vector<16x1xf32> to vector<16x6xf32>
    %48 = arith.subf %5, %47 : vector<16x6xf32>
    %49 = vector.broadcast %45 : vector<16x1xf32> to vector<16x6xf32>
    %50 = arith.mulf %49, %46 : vector<16x6xf32>
    %51 = arith.mulf %48, %50 : vector<16x6xf32>
    %c176 = arith.constant 176 : index
    %c0_21 = arith.constant 0 : index
    %52 = vector.load %arg2[%c176, %c0_21] : memref<1008x128xbf16, #tpu.memory_space<vmem>>, vector<6x128xbf16>
    %c0_22 = arith.constant 0 : index
    %c0_23 = arith.constant 0 : index
    %53 = vector.load %arg3[%c0_22, %c0_23] : memref<160x128xf32, #tpu.memory_space<vmem>>, vector<16x128xf32>
    %54 = arith.truncf %51 : vector<16x6xf32> to vector<16x6xbf16>
    %cst_24 = arith.constant dense<0.000000e+00> : vector<16x128xf32>
    %55 = tpu.matmul %54, %52, %cst_24 {dimension_numbers = #tpu.dot_dimension_numbers<[1], [0], [0], [1], [0, 0, 1, 1], [], []>} : vector<16x6xbf16>, vector<6x128xbf16>, vector<16x128xf32> -> vector<16x128xf32>
    %56 = arith.addf %55, %53 : vector<16x128xf32>
    %cst_25 = arith.constant 0.000000e+00 : f32
    %57 = vector.broadcast %cst_25 : f32 to vector<16x128xf32>
    %58 = arith.maximumf %56, %57 : vector<16x128xf32>
    %59 = arith.truncf %58 : vector<16x128xf32> to vector<16x128xbf16>
    %c192 = arith.constant 192 : index
    %c0_26 = arith.constant 0 : index
    %60 = vector.load %arg2[%c192, %c0_26] : memref<1008x128xbf16, #tpu.memory_space<vmem>>, vector<128x128xbf16>
    %c153 = arith.constant 153 : index
    %c0_27 = arith.constant 0 : index
    %61 = vector.load %arg3[%c153, %c0_27] : memref<160x128xf32, #tpu.memory_space<vmem>>, vector<1x128xf32>
    %cst_28 = arith.constant dense<0.000000e+00> : vector<16x128xf32>
    %62 = tpu.matmul %59, %60, %cst_28 {dimension_numbers = #tpu.dot_dimension_numbers<[1], [0], [0], [1], [0, 0, 1, 1], [], []>} : vector<16x128xbf16>, vector<128x128xbf16>, vector<16x128xf32> -> vector<16x128xf32>
    %63 = vector.broadcast %61 : vector<1x128xf32> to vector<16x128xf32>
    %64 = arith.addf %62, %63 : vector<16x128xf32>
    %c320 = arith.constant 320 : index
    %c0_29 = arith.constant 0 : index
    %65 = vector.load %arg2[%c320, %c0_29] : memref<1008x128xbf16, #tpu.memory_space<vmem>>, vector<128x128xbf16>
    %c154 = arith.constant 154 : index
    %c0_30 = arith.constant 0 : index
    %66 = vector.load %arg3[%c154, %c0_30] : memref<160x128xf32, #tpu.memory_space<vmem>>, vector<1x128xf32>
    %cst_31 = arith.constant dense<0.000000e+00> : vector<16x128xf32>
    %67 = tpu.matmul %59, %65, %cst_31 {dimension_numbers = #tpu.dot_dimension_numbers<[1], [0], [0], [1], [0, 0, 1, 1], [], []>} : vector<16x128xbf16>, vector<128x128xbf16>, vector<16x128xf32> -> vector<16x128xf32>
    %68 = vector.broadcast %66 : vector<1x128xf32> to vector<16x128xf32>
    %69 = arith.addf %67, %68 : vector<16x128xf32>
    %c448 = arith.constant 448 : index
    %c0_32 = arith.constant 0 : index
    %70 = vector.load %arg2[%c448, %c0_32] : memref<1008x128xbf16, #tpu.memory_space<vmem>>, vector<128x128xbf16>
    %c155 = arith.constant 155 : index
    %c0_33 = arith.constant 0 : index
    %71 = vector.load %arg3[%c155, %c0_33] : memref<160x128xf32, #tpu.memory_space<vmem>>, vector<1x128xf32>
    %cst_34 = arith.constant dense<0.000000e+00> : vector<16x128xf32>
    %72 = tpu.matmul %59, %70, %cst_34 {dimension_numbers = #tpu.dot_dimension_numbers<[1], [0], [0], [1], [0, 0, 1, 1], [], []>} : vector<16x128xbf16>, vector<128x128xbf16>, vector<16x128xf32> -> vector<16x128xf32>
    %73 = vector.broadcast %71 : vector<1x128xf32> to vector<16x128xf32>
    %74 = arith.addf %72, %73 : vector<16x128xf32>
    %75 = tpu.concatenate %64, %69, %74 in 1 : vector<16x128xf32>, vector<16x128xf32>, vector<16x128xf32> -> vector<16x384xf32>
    %c576 = arith.constant 576 : index
    %c0_35 = arith.constant 0 : index
    %76 = vector.load %arg2[%c576, %c0_35] : memref<1008x128xbf16, #tpu.memory_space<vmem>>, vector<384x48xbf16>
    %c156 = arith.constant 156 : index
    %c0_36 = arith.constant 0 : index
    %77 = vector.load %arg3[%c156, %c0_36] : memref<160x128xf32, #tpu.memory_space<vmem>>, vector<1x48xf32>
    %cst_37 = arith.constant 0.000000e+00 : f32
    %78 = vector.broadcast %cst_37 : f32 to vector<16x384xf32>
    %79 = arith.maximumf %75, %78 : vector<16x384xf32>
    %80 = arith.truncf %79 : vector<16x384xf32> to vector<16x384xbf16>
    %cst_38 = arith.constant dense<0.000000e+00> : vector<16x48xf32>
    %81 = tpu.matmul %80, %76, %cst_38 {dimension_numbers = #tpu.dot_dimension_numbers<[1], [0], [0], [1], [0, 0, 1, 1], [], []>} : vector<16x384xbf16>, vector<384x48xbf16>, vector<16x48xf32> -> vector<16x48xf32>
    %82 = vector.broadcast %77 : vector<1x48xf32> to vector<16x48xf32>
    %83 = arith.addf %81, %82 : vector<16x48xf32>
    %c960 = arith.constant 960 : index
    %c0_39 = arith.constant 0 : index
    %84 = vector.load %arg2[%c960, %c0_39] : memref<1008x128xbf16, #tpu.memory_space<vmem>>, vector<48x80xbf16>
    %c16 = arith.constant 16 : index
    %c0_40 = arith.constant 0 : index
    %85 = vector.load %arg3[%c16, %c0_40] : memref<160x128xf32, #tpu.memory_space<vmem>>, vector<16x80xf32>
    %c64 = arith.constant 64 : index
    %c0_41 = arith.constant 0 : index
    %86 = vector.load %arg3[%c64, %c0_41] : memref<160x128xf32, #tpu.memory_space<vmem>>, vector<8x16xf32>
    %c72 = arith.constant 72 : index
    %c0_42 = arith.constant 0 : index
    %87 = vector.load %arg3[%c72, %c0_42] : memref<160x128xf32, #tpu.memory_space<vmem>>, vector<80x128xf32>
    %c158 = arith.constant 158 : index
    %c0_43 = arith.constant 0 : index
    %88 = vector.load %arg3[%c158, %c0_43] : memref<160x128xf32, #tpu.memory_space<vmem>>, vector<1x128xf32>
    %cst_44 = arith.constant 0.000000e+00 : f32
    %89 = vector.broadcast %cst_44 : f32 to vector<16x48xf32>
    %90 = arith.maximumf %83, %89 : vector<16x48xf32>
    %91 = arith.truncf %90 : vector<16x48xf32> to vector<16x48xbf16>
    %cst_45 = arith.constant dense<0.000000e+00> : vector<16x80xf32>
    %92 = tpu.matmul %91, %84, %cst_45 {dimension_numbers = #tpu.dot_dimension_numbers<[1], [0], [0], [1], [0, 0, 1, 1], [], []>} : vector<16x48xbf16>, vector<48x80xbf16>, vector<16x80xf32> -> vector<16x80xf32>
    %93 = arith.mulf %92, %85 : vector<16x80xf32>
    %cst_46 = arith.constant dense<0.000000e+00> : vector<8x80xf32>
    %94 = tpu.matmul %86, %93, %cst_46 {dimension_numbers = #tpu.dot_dimension_numbers<[1], [0], [0], [1], [0, 0, 1, 1], [], []>} : vector<8x16xf32>, vector<16x80xf32>, vector<8x80xf32> -> vector<8x80xf32>
    %cst_47 = arith.constant dense<0.000000e+00> : vector<8x128xf32>
    %95 = tpu.matmul %94, %87, %cst_47 {dimension_numbers = #tpu.dot_dimension_numbers<[1], [0], [0], [1], [0, 0, 1, 1], [], []>} : vector<8x80xf32>, vector<80x128xf32>, vector<8x128xf32> -> vector<8x128xf32>
    %96 = vector.broadcast %88 : vector<1x128xf32> to vector<8x128xf32>
    %97 = arith.addf %95, %96 : vector<8x128xf32>
    %cst_48 = arith.constant 0.000000e+00 : f32
    %98 = vector.broadcast %cst_48 : f32 to vector<8x128xf32>
    %99 = arith.maximumf %97, %98 : vector<8x128xf32>
    %100 = arith.addf %99, %19 : vector<8x128xf32>
    %c0_49 = arith.constant 0 : index
    %c0_50 = arith.constant 0 : index
    %101 = vector.load %arg4[%c0_49, %c0_50] : memref<8x128xf32, #tpu.memory_space<vmem>>, vector<8x128xf32>
    tpu.vector_store %arg4[%c0_49, %c0_50], %100 {strides = array<i32>} : memref<8x128xf32, #tpu.memory_space<vmem>>, vector<8x128xf32>,
    return
  }
}

</mosaic_0001>

<llo_original>
// kernel: run_model.1
$region0: #{run_model.1}
  #allocation0 [shape = 'u32[]', space=smem, size = 0x4, offset = 0x4, fixed_abs, tag = 'smem constant byte address 0x4 - core index']
  #allocation1 [shape = 'u32[144,128]{1,0:T(1,128)}', space=vmem, size = 0x12000, scoped, tag = 'internal scratch']
  %s0 = inlined_call_operand.vmem [shape: f32[8,48], index: 0, kind: input, shape index: {}]
  %s1 = inlined_call_operand.vmem [shape: f32[16,6], index: 1, kind: input, shape index: {}]
  %s2 = inlined_call_operand.hbm [shape: bf16[1008,128], index: 2, kind: input, shape index: {}]
  %s3 = inlined_call_operand.hbm [shape: f32[160,128], index: 3, kind: input, shape index: {}]
  %s4 = inlined_call_operand.vmem [shape: f32[8,128], index: 4, kind: output, shape index: {}]
  %s5 = sld [smem:[#allocation0]]
  $region34: #{run_model.1} parent=0
    _
  %s7 = ssub.s32 1, %s5
  %s8 = scalar_select 0, %s7, %s5
  $region1: #{run_model.1} parent=0
    #allocation2 [shape = 'u8[258048]{0}', space=vmem, size = 0x3f000, scoped, tag = 'input window, operand 2, single buffered']
    #allocation3 [shape = 's32[1]{0}', space=sflag, size = 0x4, scoped, tag = 'scoped memory for run_model.1']
    #allocation4 [shape = 'u8[81920]{0}', space=vmem, size = 0x14000, scoped, tag = 'input window, operand 3, single buffered']
    #allocation5 [shape = 's32[1]{0}', space=sflag, size = 0x4, scoped, tag = 'scoped memory for run_model.1']
    %9 = vsyncpa [#allocation3], 0
    %10 = vsyncpa [#allocation5], 0
    // Predicated region
    $region2: #{run_model.1} parent=1 // pred_check
      _
    $region3: #{run_model.1} parent=1 // pred_check_branch
      %12 = sbr.rel (0) target = $region5
    $region4: #{run_model.1} parent=1 // pred_region
      _
    $region5: #{run_model.1} parent=1 // pred_fallthru
      _
    // Predicated region
    $region6: #{run_model.1} parent=1 // pred_check
      _
    $region7: #{run_model.1} parent=1 // pred_check_branch
      %14 = sbr.rel (0) target = $region9
    $region8: #{run_model.1} parent=1 // pred_region
      _
    $region9: #{run_model.1} parent=1 // pred_fallthru
      _
    // Predicated region
    $region10: #{run_model.1} parent=1 // pred_check
      _
    $region11: #{run_model.1} parent=1 // pred_check_branch
      %16 = sbr.rel (0) target = $region13
    $region12: #{run_model.1} parent=1 // pred_region
      %s18 = ssub.s32 8064, 8064
      %19 = vsyncadd [#allocation3], %s18
      %s20 = sshll.u32 [#allocation2], 4
      %s21 = int_to_ptr.vmem [resolvable:$true] %s20
      %26 = dma.hbm_to_vmem [thread:$0]  %s2, 8064, %s21, [#allocation3], 64, 64, 4
    $region13: #{run_model.1} parent=1 // pred_fallthru
      _
    // Predicated region
    $region14: #{run_model.1} parent=1 // pred_check
      _
    $region15: #{run_model.1} parent=1 // pred_check_branch
      %28 = sbr.rel (0) target = $region17
    $region16: #{run_model.1} parent=1 // pred_region
      %s30 = ssub.s32 2560, 2560
      %31 = vsyncadd [#allocation5], %s30
      %s32 = sshll.u32 [#allocation4], 4
      %s33 = int_to_ptr.vmem [resolvable:$true] %s32
      %38 = dma.hbm_to_vmem [thread:$0]  %s3, 2560, %s33, [#allocation5], 128, 128, 8
    $region17: #{run_model.1} parent=1 // pred_fallthru
      _
    // Predicated region
    $region18: #{run_model.1} parent=1 // pred_check
      _
    $region19: #{run_model.1} parent=1 // pred_check_branch
      %40 = sbr.rel (0) target = $region21
    $region20: #{run_model.1} parent=1 // pred_region
      %41 = dma.done [#allocation3], 8064
    $region21: #{run_model.1} parent=1 // pred_fallthru
      _
    // Predicated region
    $region22: #{run_model.1} parent=1 // pred_check
      _
    $region23: #{run_model.1} parent=1 // pred_check_branch
      %43 = sbr.rel (0) target = $region25
    $region24: #{run_model.1} parent=1 // pred_region
      %44 = dma.done [#allocation5], 2560
    $region25: #{run_model.1} parent=1 // pred_fallthru
      _
    %v46 = vld [vmem:[%s0] sm:$0xff]
    %v47 = vmax.f32 %v46, 0.0
    %v48 = vld [vmem:[%s1] sm:$0xff]
    %v49 = vld [vmem:[%s1 + $0x8] sm:$0xff]
    %v50 = vmax.f32 %v48, 0.0
    %v51 = vmax.f32 %v49, 0.0
    %v52 = vld [vmem:[#allocation2] sm:$0xf]
    %v53 = vld [vmem:[#allocation2 + $0x4] sm:$0xf]
    %v54 = vld [vmem:[#allocation2 + $0x8] sm:$0xf]
    %v55 = vld [vmem:[#allocation2 + $0xc] sm:$0xf]
    %v56 = vld [vmem:[#allocation2 + $0x10] sm:$0xf]
    %v57 = vld [vmem:[#allocation2 + $0x14] sm:$0xf]
    %v58 = vld [vmem:[#allocation2 + $0x18] sm:$0xf]
    %v59 = vld [vmem:[#allocation2 + $0x1c] sm:$0xf]
    %v60 = vld [vmem:[#allocation2 + $0x20] sm:$0xf]
    %v61 = vld [vmem:[#allocation2 + $0x24] sm:$0xf]
    %v62 = vld [vmem:[#allocation2 + $0x28] sm:$0xf]
    %v63 = vld [vmem:[#allocation2 + $0x2c] sm:$0xf]
    %v64 = vld [vmem:[#allocation2 + $0x30] sm:$0xf]
    %v65 = vld [vmem:[#allocation2 + $0x34] sm:$0xf]
    %v66 = vld [vmem:[#allocation2 + $0x38] sm:$0xf]
    %v67 = vld [vmem:[#allocation2 + $0x3c] sm:$0xf]
    %v68 = vld [vmem:[#allocation2 + $0x40] sm:$0xf]
    %v69 = vld [vmem:[#allocation2 + $0x44] sm:$0xf]
    %v70 = vld [vmem:[#allocation2 + $0x48] sm:$0xf]
    %v71 = vld [vmem:[#allocation2 + $0x4c] sm:$0xf]
    %v72 = vld [vmem:[#allocation2 + $0x50] sm:$0xf]
    %v73 = vld [vmem:[#allocation2 + $0x54] sm:$0xf]
    %v74 = vld [vmem:[#allocation4 + $0x98] sm:$0x1]
    %v75 = vld [vmem:[#allocation4 + $0x9d] sm:$0x1]
    %v76 = vpack.c.bf16 %v47, %v47
    %v77 = vlaneseq
    %v78 = vshrl.u32 %v77, 7
    %v79 = vsub.s32 0, %v78
    %v80 = vrot.slane %v74, %v79
    %v87 = vunpack.c.l.b16 %v52
    %v88 = vunpack.c.l.b16 %v53
    %v89 = vunpack.c.l.b16 %v54
    %v90 = vunpack.c.l.b16 %v55
    %v91 = vunpack.c.l.b16 %v56
    %v92 = vunpack.c.l.b16 %v57
    %v93 = vpack.c.b16 %v88, %v87
    %v94 = vpack.c.b16 %v90, %v89
    %v95 = vpack.c.b16 %v92, %v91
    %vm99 = vcmask 392192
    %v101 = vsel %vm99, %v76, 0
    %103 = vmatprep.subr.bf16.mxu0 0
    %104 = vmatpush1.bf16.msra.mxu0 %v93
    %105 = vmatprep.subr.bf16.mxu0 0
    %106 = vmatpush1.bf16.msra.mxu0 %v94
    %107 = vmatprep.subr.bf16.mxu0 0
    %108 = vmatpush1.bf16.msra.mxu0 %v95
    %109 = vmatprep.subr.bf16.mxu0 0
    %110 = vmatpush1.bf16.msra.mxu0 0
    %111 = vmatprep.subr.bf16.mxu0 0
    %112 = vmatpush1.bf16.msra.mxu0 0
    %113 = vmatprep.subr.bf16.mxu0 0
    %114 = vmatpush1.bf16.msra.mxu0 0
    %115 = vmatprep.subr.bf16.mxu0 0
    %116 = vmatpush1.bf16.msra.mxu0 0
    %117 = vmatprep.subr.bf16.mxu0 0
    %118 = vmatpush1.bf16.msra.mxu0 0
    %119 = vmatprep.subr.bf16.mxu0 0
    %120 = vmatpush1.bf16.msra.mxu0 0
    %121 = vmatprep.subr.bf16.mxu0 0
    %122 = vmatpush1.bf16.msra.mxu0 0
    %123 = vmatprep.subr.bf16.mxu0 0
    %124 = vmatpush1.bf16.msra.mxu0 0
    %125 = vmatprep.subr.bf16.mxu0 0
    %126 = vmatpush1.bf16.msra.mxu0 0
    %127 = vmatprep.subr.bf16.mxu0 0
    %128 = vmatpush1.bf16.msra.mxu0 0
    %129 = vmatprep.subr.bf16.mxu0 0
    %130 = vmatpush1.bf16.msra.mxu0 0
    %131 = vmatprep.subr.bf16.mxu0 0
    %132 = vmatpush1.bf16.msra.mxu0 0
    %133 = vmatprep.subr.bf16.mxu0 0
    %134 = vmatpush1.bf16.msra.mxu0 0
    %135 = vmatprep.mubr.bf16.mxu0 0
    %136 = vmatmul.mubr.bf16.gmra.mrb[0].mxu0 %v101
    %v137 = vpop.f32.mrb[0].mxu0
    %v138 = vadd.f32 %v80, %v137
    %v139 = vpop.f32.mrb[0].mxu0
    %v140 = vpop.f32.mrb[0].mxu0
    %v141 = vpop.f32.mrb[0].mxu0
    %142 = vdwg.mxu0
    %v143 = vmax.f32 %v138, 0.0
    %v144 = vpack.c.bf16 %v143, %v143
    %v145 = vlaneseq
    %v146 = vshrl.u32 %v145, 7
    %v147 = vsub.s32 0, %v146
    %v148 = vrot.slane %v75, %v147
    %v165 = vunpack.c.l.b16 %v58
    %v166 = vunpack.c.l.b16 %v59
    %v167 = vunpack.c.l.b16 %v60
    %v168 = vunpack.c.l.b16 %v61
    %v169 = vunpack.c.l.b16 %v62
    %v170 = vunpack.c.l.b16 %v63
    %v171 = vunpack.c.l.b16 %v64
    %v172 = vunpack.c.l.b16 %v65
    %v173 = vunpack.c.l.b16 %v66
    %v174 = vunpack.c.l.b16 %v67
    %v175 = vunpack.c.l.b16 %v68
    %v176 = vunpack.c.l.b16 %v69
    %v177 = vunpack.c.l.b16 %v70
    %v178 = vunpack.c.l.b16 %v71
    %v179 = vunpack.c.l.b16 %v72
    %v180 = vunpack.c.l.b16 %v73
    %v181 = vpack.c.b16 %v166, %v165
    %v182 = vpack.c.b16 %v168, %v167
    %v183 = vpack.c.b16 %v170, %v169
    %v184 = vpack.c.b16 %v172, %v171
    %v185 = vpack.c.b16 %v174, %v173
    %v186 = vpack.c.b16 %v176, %v175
    %v187 = vpack.c.b16 %v178, %v177
    %v188 = vpack.c.b16 %v180, %v179
    %197 = vmatprep.subr.bf16.mxu0 0
    %198 = vmatpush1.bf16.msra.mxu0 %v181
    %199 = vmatprep.subr.bf16.mxu0 0
    %200 = vmatpush1.bf16.msra.mxu0 %v182
    %201 = vmatprep.subr.bf16.mxu0 0
    %202 = vmatpush1.bf16.msra.mxu0 %v183
    %203 = vmatprep.subr.bf16.mxu0 0
    %204 = vmatpush1.bf16.msra.mxu0 %v184
    %205 = vmatprep.subr.bf16.mxu0 0
    %206 = vmatpush1.bf16.msra.mxu0 %v185
    %207 = vmatprep.subr.bf16.mxu0 0
    %208 = vmatpush1.bf16.msra.mxu0 %v186
    %209 = vmatprep.subr.bf16.mxu0 0
    %210 = vmatpush1.bf16.msra.mxu0 %v187
    %211 = vmatprep.subr.bf16.mxu0 0
    %212 = vmatpush1.bf16.msra.mxu0 %v188
    %213 = vmatprep.subr.bf16.mxu0 0
    %214 = vmatpush1.bf16.msra.mxu0 0
    %215 = vmatprep.subr.bf16.mxu0 0
    %216 = vmatpush1.bf16.msra.mxu0 0
    %217 = vmatprep.subr.bf16.mxu0 0
    %218 = vmatpush1.bf16.msra.mxu0 0
    %219 = vmatprep.subr.bf16.mxu0 0
    %220 = vmatpush1.bf16.msra.mxu0 0
    %221 = vmatprep.subr.bf16.mxu0 0
    %222 = vmatpush1.bf16.msra.mxu0 0
    %223 = vmatprep.subr.bf16.mxu0 0
    %224 = vmatpush1.bf16.msra.mxu0 0
    %225 = vmatprep.subr.bf16.mxu0 0
    %226 = vmatpush1.bf16.msra.mxu0 0
    %227 = vmatprep.subr.bf16.mxu0 0
    %228 = vmatpush1.bf16.msra.mxu0 0
    %229 = vmatprep.mubr.bf16.mxu0 0
    %230 = vmatmul.mubr.bf16.gmra.mrb[0].mxu0 %v144
    %v231 = vpop.f32.mrb[0].mxu0
    %v232 = vadd.f32 %v148, %v231
    %v233 = vpop.f32.mrb[0].mxu0
    %v234 = vpop.f32.mrb[0].mxu0
    %v235 = vpop.f32.mrb[0].mxu0
    %236 = vdwg.mxu0
    %v237 = vsel %vm99, %v47, 0.0
    %238 = vadd.xlane.f32.xlu0 %v237
    %v239 = vpop.xlane.xlu0 %238
    %v240 = vmul.f32 %v239, 0.020833334
    %v241 = vmul.f32 %v47, %v47
    %v242 = vsel %vm99, %v241, 0.0
    %243 = vadd.xlane.f32.xlu0 %v242
    %v244 = vpop.xlane.xlu0 %243
    %v245 = vmul.f32 %v244, 0.020833334
    %v246 = vlaneseq
    %v247 = vand.u32 %v246, 127
    %vm248 = vcmp.eq.s32.totalorder %v247, 0
    %v249 = vsel %vm248, %v240, %v245
    %v250 = vld [vmem:[#allocation4 + $0x30] sm:$0xff]
    %v251 = vld [vmem:[#allocation4 + $0x38] sm:$0xff]
    %vm252 = vcmask 64512
    %v254 = vsel %vm252, %v250, 0
    %v257 = vsel %vm252, %v251, 0
    %259 = vmatprep.subr.mxu0 0.0
    %260 = vmatpush1.msra.mxu0 %v249
    %261 = vmatprep.subr.mxu0 0.0
    %262 = vmatpush1.msra.mxu0 0.0
    %263 = vmatprep.subr.mxu0 0.0
    %264 = vmatpush1.msra.mxu0 0.0
    %265 = vmatprep.subr.mxu0 0.0
    %266 = vmatpush1.msra.mxu0 0.0
    %267 = vmatprep.subr.mxu0 0.0
    %268 = vmatpush1.msra.mxu0 0.0
    %269 = vmatprep.subr.mxu0 0.0
    %270 = vmatpush1.msra.mxu0 0.0
    %271 = vmatprep.subr.mxu0 0.0
    %272 = vmatpush1.msra.mxu0 0.0
    %273 = vmatprep.subr.mxu0 0.0
    %274 = vmatpush1.msra.mxu0 0.0
    %275 = vmatprep.subr.mxu0 0.0
    %276 = vmatpush1.msra.mxu0 0.0
    %277 = vmatprep.subr.mxu0 0.0
    %278 = vmatpush1.msra.mxu0 0.0
    %279 = vmatprep.subr.mxu0 0.0
    %280 = vmatpush1.msra.mxu0 0.0
    %281 = vmatprep.subr.mxu0 0.0
    %282 = vmatpush1.msra.mxu0 0.0
    %283 = vmatprep.subr.mxu0 0.0
    %284 = vmatpush1.msra.mxu0 0.0
    %285 = vmatprep.subr.mxu0 0.0
    %286 = vmatpush1.msra.mxu0 0.0
    %287 = vmatprep.subr.mxu0 0.0
    %288 = vmatpush1.msra.mxu0 0.0
    %289 = vmatprep.subr.mxu0 0.0
    %290 = vmatpush1.msra.mxu0 0.0
    %291 = vmatprep.subr.mxu0 0.0
    %292 = vmatpush1.msra.mxu0 0.0
    %293 = vmatprep.subr.mxu0 0.0
    %294 = vmatpush1.msra.mxu0 0.0
    %295 = vmatprep.subr.mxu0 0.0
    %296 = vmatpush1.msra.mxu0 0.0
    %297 = vmatprep.subr.mxu0 0.0
    %298 = vmatpush1.msra.mxu0 0.0
    %299 = vmatprep.subr.mxu0 0.0
    %300 = vmatpush1.msra.mxu0 0.0
    %301 = vmatprep.subr.mxu0 0.0
    %302 = vmatpush1.msra.mxu0 0.0
    %303 = vmatprep.subr.mxu0 0.0
    %304 = vmatpush1.msra.mxu0 0.0
    %305 = vmatprep.subr.mxu0 0.0
    %306 = vmatpush1.msra.mxu0 0.0
    %307 = vmatprep.subr.mxu0 0.0
    %308 = vmatpush1.msra.mxu0 0.0
    %309 = vmatprep.subr.mxu0 0.0
    %310 = vmatpush1.msra.mxu0 0.0
    %311 = vmatprep.subr.mxu0 0.0
    %312 = vmatpush1.msra.mxu0 0.0
    %313 = vmatprep.subr.mxu0 0.0
    %314 = vmatpush1.msra.mxu0 0.0
    %315 = vmatprep.subr.mxu0 0.0
    %316 = vmatpush1.msra.mxu0 0.0
    %317 = vmatprep.subr.mxu0 0.0
    %318 = vmatpush1.msra.mxu0 0.0
    %319 = vmatprep.subr.mxu0 0.0
    %320 = vmatpush1.msra.mxu0 0.0
    %321 = vmatprep.subr.mxu0 0.0
    %322 = vmatpush1.msra.mxu0 0.0
    %323 = vmatprep.mubr.f32.mxu0 0.0
    %324 = vmatmul.mubr.f32.gmra.mrb[0].mxu0 %v254
    %v325 = vpop.f32.mrb[0].mxu0
    %v326 = vadd.f32 0.0, %v325
    %v327 = vpop.f32.mrb[0].mxu0
    %328 = vmatprep.mubr.f32.mxu0 0.0
    %329 = vmatmul.mubr.f32.gmra.mrb[0].mxu0 %v257
    %v330 = vpop.f32.mrb[0].mxu0
    %v331 = vadd.f32 0.0, %v330
    %v332 = vpop.f32.mrb[0].mxu0
    %333 = vdwg.mxu0
    %v334 = vmul.f32 %v326, %v326
    %v335 = vmul.f32 %v331, %v331
    %338 = vrot.lane.b32.xlu0 %v334, 1
    %v339 = vpop.permute.xlu0 %338
    %340 = vrot.lane.b32.xlu0 %v335, 1
    %v341 = vpop.permute.xlu0 %340
    %v344 = vsub.f32 %v326, %v339
    %v345 = vsub.f32 %v331, %v341
    %v346 = vadd.f32 %v344, 1e-05
    %v347 = vadd.f32 %v345, 1e-05
    %v348 = vrsqrt.pop %v346
    %v349 = vrsqrt.pop %v347
    %v350 = vld [vmem:[#allocation4 + $0x20] sm:$0xff]
    %v351 = vld [vmem:[#allocation4 + $0x28] sm:$0xff]
    %353 = vset.pattern.permute.xlu0 0
    %354 = vperm.xlu0 %353, %v326
    %v355 = vpop.permute.xlu0 %354
    %358 = vset.pattern.permute.xlu0 0
    %359 = vperm.xlu0 %358, %v331
    %v360 = vpop.permute.xlu0 %359
    %v362 = vsub.f32 %v50, %v355
    %v363 = vsub.f32 %v51, %v360
    %365 = vset.pattern.permute.xlu0 1
    %366 = vperm.xlu0 %365, %v348
    %v367 = vpop.permute.xlu0 %366
    %370 = vset.pattern.permute.xlu0 1
    %371 = vperm.xlu0 %370, %v349
    %v372 = vpop.permute.xlu0 %371
    %v374 = vmul.f32 %v367, %v350
    %v375 = vmul.f32 %v372, %v351
    %v376 = vmul.f32 %v362, %v374
    %v377 = vmul.f32 %v363, %v375
    %v378 = vld [vmem:[#allocation2 + $0x58] sm:$0x7]
    %v379 = vld [vmem:[#allocation4] sm:$0xff]
    %v380 = vld [vmem:[#allocation4 + $0x8] sm:$0xff]
    %v381 = vpack.c.bf16 %v377, %v376
    %vm382 = vcmask 48128
    %v384 = vsel %vm382, %v381, 0
    %vm386 = vcmask 1042432
    %v388 = vsel %vm386, %v378, 0
    %390 = vmatprep.subr.bf16.mxu0 0
    %391 = vmatpush1.bf16.msra.mxu0 %v388
    %392 = vmatprep.subr.bf16.mxu0 0
    %393 = vmatpush1.bf16.msra.mxu0 0
    %394 = vmatprep.subr.bf16.mxu0 0
    %395 = vmatpush1.bf16.msra.mxu0 0
    %396 = vmatprep.subr.bf16.mxu0 0
    %397 = vmatpush1.bf16.msra.mxu0 0
    %398 = vmatprep.subr.bf16.mxu0 0
    %399 = vmatpush1.bf16.msra.mxu0 0
    %400 = vmatprep.subr.bf16.mxu0 0
    %401 = vmatpush1.bf16.msra.mxu0 0
    %402 = vmatprep.subr.bf16.mxu0 0
    %403 = vmatpush1.bf16.msra.mxu0 0
    %404 = vmatprep.subr.bf16.mxu0 0
    %405 = vmatpush1.bf16.msra.mxu0 0
    %406 = vmatprep.subr.bf16.mxu0 0
    %407 = vmatpush1.bf16.msra.mxu0 0
    %408 = vmatprep.subr.bf16.mxu0 0
    %409 = vmatpush1.bf16.msra.mxu0 0
    %410 = vmatprep.subr.bf16.mxu0 0
    %411 = vmatpush1.bf16.msra.mxu0 0
    %412 = vmatprep.subr.bf16.mxu0 0
    %413 = vmatpush1.bf16.msra.mxu0 0
    %414 = vmatprep.subr.bf16.mxu0 0
    %415 = vmatpush1.bf16.msra.mxu0 0
    %416 = vmatprep.subr.bf16.mxu0 0
    %417 = vmatpush1.bf16.msra.mxu0 0
    %418 = vmatprep.subr.bf16.mxu0 0
    %419 = vmatpush1.bf16.msra.mxu0 0
    %420 = vmatprep.subr.bf16.mxu0 0
    %421 = vmatpush1.bf16.msra.mxu0 0
    %422 = vmatprep.mubr.bf16.mxu0 0
    %423 = vmatmul.mubr.bf16.gmra.mrb[0].mxu0 %v384
    %v424 = vpop.f32.mrb[0].mxu0
    %v425 = vadd.f32 %v379, %v424
    %v426 = vpop.f32.mrb[0].mxu0
    %v427 = vpop.f32.mrb[0].mxu0
    %v428 = vadd.f32 %v380, %v427
    %v429 = vpop.f32.mrb[0].mxu0
    %430 = vdwg.mxu0
    %v431 = vmax.f32 %v425, 0.0
    %v432 = vmax.f32 %v428, 0.0
    %v433 = vpack.c.bf16 %v432, %v431
    %v434 = vld [vmem:[#allocation2 + $0x60] sm:$0xf]
    %v435 = vld [vmem:[#allocation2 + $0x64] sm:$0xf]
    %v436 = vld [vmem:[#allocation2 + $0x68] sm:$0xf]
    %v437 = vld [vmem:[#allocation2 + $0x6c] sm:$0xf]
    %v438 = vld [vmem:[#allocation2 + $0x70] sm:$0xf]
    %v439 = vld [vmem:[#allocation2 + $0x74] sm:$0xf]
    %v440 = vld [vmem:[#allocation2 + $0x78] sm:$0xf]
    %v441 = vld [vmem:[#allocation2 + $0x7c] sm:$0xf]
    %v442 = vld [vmem:[#allocation2 + $0x80] sm:$0xf]
    %v443 = vld [vmem:[#allocation2 + $0x84] sm:$0xf]
    %v444 = vld [vmem:[#allocation2 + $0x88] sm:$0xf]
    %v445 = vld [vmem:[#allocation2 + $0x8c] sm:$0xf]
    %v446 = vld [vmem:[#allocation2 + $0x90] sm:$0xf]
    %v447 = vld [vmem:[#allocation2 + $0x94] sm:$0xf]
    %v448 = vld [vmem:[#allocation2 + $0x98] sm:$0xf]
    %v449 = vld [vmem:[#allocation2 + $0x9c] sm:$0xf]
    %v450 = vld [vmem:[#allocation4 + $0x99] sm:$0x1]
    %v451 = vlaneseq
    %v452 = vshrl.u32 %v451, 7
    %v453 = vsub.s32 0, %v452
    %v454 = vrot.slane %v450, %v453
    %v471 = vunpack.c.l.b16 %v434
    %v472 = vunpack.c.l.b16 %v435
    %v473 = vunpack.c.l.b16 %v436
    %v474 = vunpack.c.l.b16 %v437
    %v475 = vunpack.c.l.b16 %v438
    %v476 = vunpack.c.l.b16 %v439
    %v477 = vunpack.c.l.b16 %v440
    %v478 = vunpack.c.l.b16 %v441
    %v479 = vunpack.c.l.b16 %v442
    %v480 = vunpack.c.l.b16 %v443
    %v481 = vunpack.c.l.b16 %v444
    %v482 = vunpack.c.l.b16 %v445
    %v483 = vunpack.c.l.b16 %v446
    %v484 = vunpack.c.l.b16 %v447
    %v485 = vunpack.c.l.b16 %v448
    %v486 = vunpack.c.l.b16 %v449
    %v487 = vpack.c.b16 %v472, %v471
    %v488 = vpack.c.b16 %v474, %v473
    %v489 = vpack.c.b16 %v476, %v475
    %v490 = vpack.c.b16 %v478, %v477
    %v491 = vpack.c.b16 %v480, %v479
    %v492 = vpack.c.b16 %v482, %v481
    %v493 = vpack.c.b16 %v484, %v483
    %v494 = vpack.c.b16 %v486, %v485
    %503 = vmatprep.subr.bf16.mxu0 0
    %504 = vmatpush1.bf16.msra.mxu0 %v487
    %505 = vmatprep.subr.bf16.mxu0 0
    %506 = vmatpush1.bf16.msra.mxu0 %v488
    %507 = vmatprep.subr.bf16.mxu0 0
    %508 = vmatpush1.bf16.msra.mxu0 %v489
    %509 = vmatprep.subr.bf16.mxu0 0
    %510 = vmatpush1.bf16.msra.mxu0 %v490
    %511 = vmatprep.subr.bf16.mxu0 0
    %512 = vmatpush1.bf16.msra.mxu0 %v491
    %513 = vmatprep.subr.bf16.mxu0 0
    %514 = vmatpush1.bf16.msra.mxu0 %v492
    %515 = vmatprep.subr.bf16.mxu0 0
    %516 = vmatpush1.bf16.msra.mxu0 %v493
    %517 = vmatprep.subr.bf16.mxu0 0
    %518 = vmatpush1.bf16.msra.mxu0 %v494
    %519 = vmatprep.subr.bf16.mxu0 0
    %520 = vmatpush1.bf16.msra.mxu0 0
    %521 = vmatprep.subr.bf16.mxu0 0
    %522 = vmatpush1.bf16.msra.mxu0 0
    %523 = vmatprep.subr.bf16.mxu0 0
    %524 = vmatpush1.bf16.msra.mxu0 0
    %525 = vmatprep.subr.bf16.mxu0 0
    %526 = vmatpush1.bf16.msra.mxu0 0
    %527 = vmatprep.subr.bf16.mxu0 0
    %528 = vmatpush1.bf16.msra.mxu0 0
    %529 = vmatprep.subr.bf16.mxu0 0
    %530 = vmatpush1.bf16.msra.mxu0 0
    %531 = vmatprep.subr.bf16.mxu0 0
    %532 = vmatpush1.bf16.msra.mxu0 0
    %533 = vmatprep.subr.bf16.mxu0 0
    %534 = vmatpush1.bf16.msra.mxu0 0
    %535 = vmatprep.mubr.bf16.mxu0 0
    %536 = vmatmul.mubr.bf16.gmra.mrb[0].mxu0 %v433
    %v537 = vpop.f32.mrb[0].mxu0
    %v538 = vadd.f32 %v454, %v537
    %v539 = vpop.f32.mrb[0].mxu0
    %v540 = vpop.f32.mrb[0].mxu0
    %v541 = vadd.f32 %v454, %v540
    %v542 = vpop.f32.mrb[0].mxu0
    %543 = vdwg.mxu0
    %v544 = vld [vmem:[#allocation2 + $0xa0] sm:$0xf]
    %v545 = vld [vmem:[#allocation2 + $0xa4] sm:$0xf]
    %v546 = vld [vmem:[#allocation2 + $0xa8] sm:$0xf]
    %v547 = vld [vmem:[#allocation2 + $0xac] sm:$0xf]
    %v548 = vld [vmem:[#allocation2 + $0xb0] sm:$0xf]
    %v549 = vld [vmem:[#allocation2 + $0xb4] sm:$0xf]
    %v550 = vld [vmem:[#allocation2 + $0xb8] sm:$0xf]
    %v551 = vld [vmem:[#allocation2 + $0xbc] sm:$0xf]
    %v552 = vld [vmem:[#allocation2 + $0xc0] sm:$0xf]
    %v553 = vld [vmem:[#allocation2 + $0xc4] sm:$0xf]
    %v554 = vld [vmem:[#allocation2 + $0xc8] sm:$0xf]
    %v555 = vld [vmem:[#allocation2 + $0xcc] sm:$0xf]
    %v556 = vld [vmem:[#allocation2 + $0xd0] sm:$0xf]
    %v557 = vld [vmem:[#allocation2 + $0xd4] sm:$0xf]
    %v558 = vld [vmem:[#allocation2 + $0xd8] sm:$0xf]
    %v559 = vld [vmem:[#allocation2 + $0xdc] sm:$0xf]
    %v560 = vld [vmem:[#allocation4 + $0x9a] sm:$0x1]
    %v561 = vlaneseq
    %v562 = vshrl.u32 %v561, 7
    %v563 = vsub.s32 0, %v562
    %v564 = vrot.slane %v560, %v563
    %v581 = vunpack.c.l.b16 %v544
    %v582 = vunpack.c.l.b16 %v545
    %v583 = vunpack.c.l.b16 %v546
    %v584 = vunpack.c.l.b16 %v547
    %v585 = vunpack.c.l.b16 %v548
    %v586 = vunpack.c.l.b16 %v549
    %v587 = vunpack.c.l.b16 %v550
    %v588 = vunpack.c.l.b16 %v551
    %v589 = vunpack.c.l.b16 %v552
    %v590 = vunpack.c.l.b16 %v553
    %v591 = vunpack.c.l.b16 %v554
    %v592 = vunpack.c.l.b16 %v555
    %v593 = vunpack.c.l.b16 %v556
    %v594 = vunpack.c.l.b16 %v557
    %v595 = vunpack.c.l.b16 %v558
    %v596 = vunpack.c.l.b16 %v559
    %v597 = vpack.c.b16 %v582, %v581
    %v598 = vpack.c.b16 %v584, %v583
    %v599 = vpack.c.b16 %v586, %v585
    %v600 = vpack.c.b16 %v588, %v587
    %v601 = vpack.c.b16 %v590, %v589
    %v602 = vpack.c.b16 %v592, %v591
    %v603 = vpack.c.b16 %v594, %v593
    %v604 = vpack.c.b16 %v596, %v595
    %613 = vmatprep.subr.bf16.mxu0 0
    %614 = vmatpush1.bf16.msra.mxu0 %v597
    %615 = vmatprep.subr.bf16.mxu0 0
    %616 = vmatpush1.bf16.msra.mxu0 %v598
    %617 = vmatprep.subr.bf16.mxu0 0
    %618 = vmatpush1.bf16.msra.mxu0 %v599
    %619 = vmatprep.subr.bf16.mxu0 0
    %620 = vmatpush1.bf16.msra.mxu0 %v600
    %621 = vmatprep.subr.bf16.mxu0 0
    %622 = vmatpush1.bf16.msra.mxu0 %v601
    %623 = vmatprep.subr.bf16.mxu0 0
    %624 = vmatpush1.bf16.msra.mxu0 %v602
    %625 = vmatprep.subr.bf16.mxu0 0
    %626 = vmatpush1.bf16.msra.mxu0 %v603
    %627 = vmatprep.subr.bf16.mxu0 0
    %628 = vmatpush1.bf16.msra.mxu0 %v604
    %629 = vmatprep.subr.bf16.mxu0 0
    %630 = vmatpush1.bf16.msra.mxu0 0
    %631 = vmatprep.subr.bf16.mxu0 0
    %632 = vmatpush1.bf16.msra.mxu0 0
    %633 = vmatprep.subr.bf16.mxu0 0
    %634 = vmatpush1.bf16.msra.mxu0 0
    %635 = vmatprep.subr.bf16.mxu0 0
    %636 = vmatpush1.bf16.msra.mxu0 0
    %637 = vmatprep.subr.bf16.mxu0 0
    %638 = vmatpush1.bf16.msra.mxu0 0
    %639 = vmatprep.subr.bf16.mxu0 0
    %640 = vmatpush1.bf16.msra.mxu0 0
    %641 = vmatprep.subr.bf16.mxu0 0
    %642 = vmatpush1.bf16.msra.mxu0 0
    %643 = vmatprep.subr.bf16.mxu0 0
    %644 = vmatpush1.bf16.msra.mxu0 0
    %645 = vmatprep.mubr.bf16.mxu0 0
    %646 = vmatmul.mubr.bf16.gmra.mrb[0].mxu0 %v433
    %v647 = vpop.f32.mrb[0].mxu0
    %v648 = vadd.f32 %v564, %v647
    %v649 = vpop.f32.mrb[0].mxu0
    %v650 = vpop.f32.mrb[0].mxu0
    %v651 = vadd.f32 %v564, %v650
    %v652 = vpop.f32.mrb[0].mxu0
    %653 = vdwg.mxu0
    %v654 = vld [vmem:[#allocation2 + $0xe0] sm:$0xf]
    %v655 = vld [vmem:[#allocation2 + $0xe4] sm:$0xf]
    %v656 = vld [vmem:[#allocation2 + $0xe8] sm:$0xf]
    %v657 = vld [vmem:[#allocation2 + $0xec] sm:$0xf]
    %v658 = vld [vmem:[#allocation2 + $0xf0] sm:$0xf]
    %v659 = vld [vmem:[#allocation2 + $0xf4] sm:$0xf]
    %v660 = vld [vmem:[#allocation2 + $0xf8] sm:$0xf]
    %v661 = vld [vmem:[#allocation2 + $0xfc] sm:$0xf]
    %v662 = vld [vmem:[#allocation2 + $0x100] sm:$0xf]
    %v663 = vld [vmem:[#allocation2 + $0x104] sm:$0xf]
    %v664 = vld [vmem:[#allocation2 + $0x108] sm:$0xf]
    %v665 = vld [vmem:[#allocation2 + $0x10c] sm:$0xf]
    %v666 = vld [vmem:[#allocation2 + $0x110] sm:$0xf]
    %v667 = vld [vmem:[#allocation2 + $0x114] sm:$0xf]
    %v668 = vld [vmem:[#allocation2 + $0x118] sm:$0xf]
    %v669 = vld [vmem:[#allocation2 + $0x11c] sm:$0xf]
    %v670 = vld [vmem:[#allocation4 + $0x9b] sm:$0x1]
    %v671 = vlaneseq
    %v672 = vshrl.u32 %v671, 7
    %v673 = vsub.s32 0, %v672
    %v674 = vrot.slane %v670, %v673
    %v691 = vunpack.c.l.b16 %v654
    %v692 = vunpack.c.l.b16 %v655
    %v693 = vunpack.c.l.b16 %v656
    %v694 = vunpack.c.l.b16 %v657
    %v695 = vunpack.c.l.b16 %v658
    %v696 = vunpack.c.l.b16 %v659
    %v697 = vunpack.c.l.b16 %v660
    %v698 = vunpack.c.l.b16 %v661
    %v699 = vunpack.c.l.b16 %v662
    %v700 = vunpack.c.l.b16 %v663
    %v701 = vunpack.c.l.b16 %v664
    %v702 = vunpack.c.l.b16 %v665
    %v703 = vunpack.c.l.b16 %v666
    %v704 = vunpack.c.l.b16 %v667
    %v705 = vunpack.c.l.b16 %v668
    %v706 = vunpack.c.l.b16 %v669
    %v707 = vpack.c.b16 %v692, %v691
    %v708 = vpack.c.b16 %v694, %v693
    %v709 = vpack.c.b16 %v696, %v695
    %v710 = vpack.c.b16 %v698, %v697
    %v711 = vpack.c.b16 %v700, %v699
    %v712 = vpack.c.b16 %v702, %v701
    %v713 = vpack.c.b16 %v704, %v703
    %v714 = vpack.c.b16 %v706, %v705
    %723 = vmatprep.subr.bf16.mxu0 0
    %724 = vmatpush1.bf16.msra.mxu0 %v707
    %725 = vmatprep.subr.bf16.mxu0 0
    %726 = vmatpush1.bf16.msra.mxu0 %v708
    %727 = vmatprep.subr.bf16.mxu0 0
    %728 = vmatpush1.bf16.msra.mxu0 %v709
    %729 = vmatprep.subr.bf16.mxu0 0
    %730 = vmatpush1.bf16.msra.mxu0 %v710
    %731 = vmatprep.subr.bf16.mxu0 0
    %732 = vmatpush1.bf16.msra.mxu0 %v711
    %733 = vmatprep.subr.bf16.mxu0 0
    %734 = vmatpush1.bf16.msra.mxu0 %v712
    %735 = vmatprep.subr.bf16.mxu0 0
    %736 = vmatpush1.bf16.msra.mxu0 %v713
    %737 = vmatprep.subr.bf16.mxu0 0
    %738 = vmatpush1.bf16.msra.mxu0 %v714
    %739 = vmatprep.subr.bf16.mxu0 0
    %740 = vmatpush1.bf16.msra.mxu0 0
    %741 = vmatprep.subr.bf16.mxu0 0
    %742 = vmatpush1.bf16.msra.mxu0 0
    %743 = vmatprep.subr.bf16.mxu0 0
    %744 = vmatpush1.bf16.msra.mxu0 0
    %745 = vmatprep.subr.bf16.mxu0 0
    %746 = vmatpush1.bf16.msra.mxu0 0
    %747 = vmatprep.subr.bf16.mxu0 0
    %748 = vmatpush1.bf16.msra.mxu0 0
    %749 = vmatprep.subr.bf16.mxu0 0
    %750 = vmatpush1.bf16.msra.mxu0 0
    %751 = vmatprep.subr.bf16.mxu0 0
    %752 = vmatpush1.bf16.msra.mxu0 0
    %753 = vmatprep.subr.bf16.mxu0 0
    %754 = vmatpush1.bf16.msra.mxu0 0
    %755 = vmatprep.mubr.bf16.mxu0 0
    %756 = vmatmul.mubr.bf16.gmra.mrb[0].mxu0 %v433
    %v757 = vpop.f32.mrb[0].mxu0
    %v758 = vadd.f32 %v674, %v757
    %v759 = vpop.f32.mrb[0].mxu0
    %v760 = vpop.f32.mrb[0].mxu0
    %v761 = vadd.f32 %v674, %v760
    %v762 = vpop.f32.mrb[0].mxu0
    %763 = vdwg.mxu0
    %v764 = vld [vmem:[#allocation2 + $0x120] sm:$0xf]
    %v765 = vld [vmem:[#allocation2 + $0x124] sm:$0xf]
    %v766 = vld [vmem:[#allocation2 + $0x128] sm:$0xf]
    %v767 = vld [vmem:[#allocation2 + $0x12c] sm:$0xf]
    %v768 = vld [vmem:[#allocation2 + $0x130] sm:$0xf]
    %v769 = vld [vmem:[#allocation2 + $0x134] sm:$0xf]
    %v770 = vld [vmem:[#allocation2 + $0x138] sm:$0xf]
    %v771 = vld [vmem:[#allocation2 + $0x13c] sm:$0xf]
    %v772 = vld [vmem:[#allocation2 + $0x140] sm:$0xf]
    %v773 = vld [vmem:[#allocation2 + $0x144] sm:$0xf]
    %v774 = vld [vmem:[#allocation2 + $0x148] sm:$0xf]
    %v775 = vld [vmem:[#allocation2 + $0x14c] sm:$0xf]
    %v776 = vld [vmem:[#allocation2 + $0x150] sm:$0xf]
    %v777 = vld [vmem:[#allocation2 + $0x154] sm:$0xf]
    %v778 = vld [vmem:[#allocation2 + $0x158] sm:$0xf]
    %v779 = vld [vmem:[#allocation2 + $0x15c] sm:$0xf]
    %v780 = vld [vmem:[#allocation2 + $0x160] sm:$0xf]
    %v781 = vld [vmem:[#allocation2 + $0x164] sm:$0xf]
    %v782 = vld [vmem:[#allocation2 + $0x168] sm:$0xf]
    %v783 = vld [vmem:[#allocation2 + $0x16c] sm:$0xf]
    %v784 = vld [vmem:[#allocation2 + $0x170] sm:$0xf]
    %v785 = vld [vmem:[#allocation2 + $0x174] sm:$0xf]
    %v786 = vld [vmem:[#allocation2 + $0x178] sm:$0xf]
    %v787 = vld [vmem:[#allocation2 + $0x17c] sm:$0xf]
    %v788 = vld [vmem:[#allocation2 + $0x180] sm:$0xf]
    %v789 = vld [vmem:[#allocation2 + $0x184] sm:$0xf]
    %v790 = vld [vmem:[#allocation2 + $0x188] sm:$0xf]
    %v791 = vld [vmem:[#allocation2 + $0x18c] sm:$0xf]
    %v792 = vld [vmem:[#allocation2 + $0x190] sm:$0xf]
    %v793 = vld [vmem:[#allocation2 + $0x194] sm:$0xf]
    %v794 = vld [vmem:[#allocation2 + $0x198] sm:$0xf]
    %v795 = vld [vmem:[#allocation2 + $0x19c] sm:$0xf]
    %v796 = vld [vmem:[#allocation2 + $0x1a0] sm:$0xf]
    %v797 = vld [vmem:[#allocation2 + $0x1a4] sm:$0xf]
    %v798 = vld [vmem:[#allocation2 + $0x1a8] sm:$0xf]
    %v799 = vld [vmem:[#allocation2 + $0x1ac] sm:$0xf]
    %v800 = vld [vmem:[#allocation2 + $0x1b0] sm:$0xf]
    %v801 = vld [vmem:[#allocation2 + $0x1b4] sm:$0xf]
    %v802 = vld [vmem:[#allocation2 + $0x1b8] sm:$0xf]
    %v803 = vld [vmem:[#allocation2 + $0x1bc] sm:$0xf]
    %v804 = vld [vmem:[#allocation2 + $0x1c0] sm:$0xf]
    %v805 = vld [vmem:[#allocation2 + $0x1c4] sm:$0xf]
    %v806 = vld [vmem:[#allocation2 + $0x1c8] sm:$0xf]
    %v807 = vld [vmem:[#allocation2 + $0x1cc] sm:$0xf]
    %v808 = vld [vmem:[#allocation2 + $0x1d0] sm:$0xf]
    %v809 = vld [vmem:[#allocation2 + $0x1d4] sm:$0xf]
    %v810 = vld [vmem:[#allocation2 + $0x1d8] sm:$0xf]
    %v811 = vld [vmem:[#allocation2 + $0x1dc] sm:$0xf]
    %v812 = vld [vmem:[#allocation4 + $0x9c] sm:$0x1]
    %v813 = vmax.f32 %v538, 0.0
    %v814 = vmax.f32 %v648, 0.0
    %v815 = vmax.f32 %v758, 0.0
    %v816 = vmax.f32 %v541, 0.0
    %v817 = vmax.f32 %v651, 0.0
    %v818 = vmax.f32 %v761, 0.0
    %v819 = vpack.c.bf16 %v816, %v813
    %v820 = vpack.c.bf16 %v817, %v814
    %v821 = vpack.c.bf16 %v818, %v815
    %v822 = vlaneseq
    %v823 = vshrl.u32 %v822, 7
    %v824 = vsub.s32 0, %v823
    %v825 = vrot.slane %v812, %v824
    %v874 = vunpack.c.l.b16 %v764
    %v875 = vunpack.c.l.b16 %v765
    %v876 = vunpack.c.l.b16 %v766
    %v877 = vunpack.c.l.b16 %v767
    %v878 = vunpack.c.l.b16 %v768
    %v879 = vunpack.c.l.b16 %v769
    %v880 = vunpack.c.l.b16 %v770
    %v881 = vunpack.c.l.b16 %v771
    %v882 = vunpack.c.l.b16 %v772
    %v883 = vunpack.c.l.b16 %v773
    %v884 = vunpack.c.l.b16 %v774
    %v885 = vunpack.c.l.b16 %v775
    %v886 = vunpack.c.l.b16 %v776
    %v887 = vunpack.c.l.b16 %v777
    %v888 = vunpack.c.l.b16 %v778
    %v889 = vunpack.c.l.b16 %v779
    %v890 = vunpack.c.l.b16 %v780
    %v891 = vunpack.c.l.b16 %v781
    %v892 = vunpack.c.l.b16 %v782
    %v893 = vunpack.c.l.b16 %v783
    %v894 = vunpack.c.l.b16 %v784
    %v895 = vunpack.c.l.b16 %v785
    %v896 = vunpack.c.l.b16 %v786
    %v897 = vunpack.c.l.b16 %v787
    %v898 = vunpack.c.l.b16 %v788
    %v899 = vunpack.c.l.b16 %v789
    %v900 = vunpack.c.l.b16 %v790
    %v901 = vunpack.c.l.b16 %v791
    %v902 = vunpack.c.l.b16 %v792
    %v903 = vunpack.c.l.b16 %v793
    %v904 = vunpack.c.l.b16 %v794
    %v905 = vunpack.c.l.b16 %v795
    %v906 = vunpack.c.l.b16 %v796
    %v907 = vunpack.c.l.b16 %v797
    %v908 = vunpack.c.l.b16 %v798
    %v909 = vunpack.c.l.b16 %v799
    %v910 = vunpack.c.l.b16 %v800
    %v911 = vunpack.c.l.b16 %v801
    %v912 = vunpack.c.l.b16 %v802
    %v913 = vunpack.c.l.b16 %v803
    %v914 = vunpack.c.l.b16 %v804
    %v915 = vunpack.c.l.b16 %v805
    %v916 = vunpack.c.l.b16 %v806
    %v917 = vunpack.c.l.b16 %v807
    %v918 = vunpack.c.l.b16 %v808
    %v919 = vunpack.c.l.b16 %v809
    %v920 = vunpack.c.l.b16 %v810
    %v921 = vunpack.c.l.b16 %v811
    %v922 = vpack.c.b16 %v875, %v874
    %v923 = vpack.c.b16 %v877, %v876
    %v924 = vpack.c.b16 %v879, %v878
    %v925 = vpack.c.b16 %v881, %v880
    %v926 = vpack.c.b16 %v883, %v882
    %v927 = vpack.c.b16 %v885, %v884
    %v928 = vpack.c.b16 %v887, %v886
    %v929 = vpack.c.b16 %v889, %v888
    %v930 = vpack.c.b16 %v891, %v890
    %v931 = vpack.c.b16 %v893, %v892
    %v932 = vpack.c.b16 %v895, %v894
    %v933 = vpack.c.b16 %v897, %v896
    %v934 = vpack.c.b16 %v899, %v898
    %v935 = vpack.c.b16 %v901, %v900
    %v936 = vpack.c.b16 %v903, %v902
    %v937 = vpack.c.b16 %v905, %v904
    %v938 = vpack.c.b16 %v907, %v906
    %v939 = vpack.c.b16 %v909, %v908
    %v940 = vpack.c.b16 %v911, %v910
    %v941 = vpack.c.b16 %v913, %v912
    %v942 = vpack.c.b16 %v915, %v914
    %v943 = vpack.c.b16 %v917, %v916
    %v944 = vpack.c.b16 %v919, %v918
    %v945 = vpack.c.b16 %v921, %v920
    %970 = vmatprep.subr.bf16.mxu0 0
    %971 = vmatpush1.bf16.msra.mxu0 %v922
    %972 = vmatprep.subr.bf16.mxu0 0
    %973 = vmatpush1.bf16.msra.mxu0 %v923
    %974 = vmatprep.subr.bf16.mxu0 0
    %975 = vmatpush1.bf16.msra.mxu0 %v924
    %976 = vmatprep.subr.bf16.mxu0 0
    %977 = vmatpush1.bf16.msra.mxu0 %v925
    %978 = vmatprep.subr.bf16.mxu0 0
    %979 = vmatpush1.bf16.msra.mxu0 %v926
    %980 = vmatprep.subr.bf16.mxu0 0
    %981 = vmatpush1.bf16.msra.mxu0 %v927
    %982 = vmatprep.subr.bf16.mxu0 0
    %983 = vmatpush1.bf16.msra.mxu0 %v928
    %984 = vmatprep.subr.bf16.mxu0 0
    %985 = vmatpush1.bf16.msra.mxu0 %v929
    %986 = vmatprep.subr.bf16.mxu0 0
    %987 = vmatpush1.bf16.msra.mxu0 %v930
    %988 = vmatprep.subr.bf16.mxu0 0
    %989 = vmatpush1.bf16.msra.mxu0 %v931
    %990 = vmatprep.subr.bf16.mxu0 0
    %991 = vmatpush1.bf16.msra.mxu0 %v932
    %992 = vmatprep.subr.bf16.mxu0 0
    %993 = vmatpush1.bf16.msra.mxu0 %v933
    %994 = vmatprep.subr.bf16.mxu0 0
    %995 = vmatpush1.bf16.msra.mxu0 %v934
    %996 = vmatprep.subr.bf16.mxu0 0
    %997 = vmatpush1.bf16.msra.mxu0 %v935
    %998 = vmatprep.subr.bf16.mxu0 0
    %999 = vmatpush1.bf16.msra.mxu0 %v936
    %1000 = vmatprep.subr.bf16.mxu0 0
    %1001 = vmatpush1.bf16.msra.mxu0 %v937
    %1002 = vmatprep.mubr.bf16.mxu0 %v820
    %1003 = vmatmul.mubr.bf16.gmra.mrb[0].mxu0 %v819
    %v1004 = vpop.f32.mrb[0].mxu0
    %v1005 = vadd.f32 %v825, %v1004
    %v1006 = vpop.f32.mrb[0].mxu0
    %v1007 = vpop.f32.mrb[0].mxu0
    %v1008 = vadd.f32 %v825, %v1007
    %v1009 = vpop.f32.mrb[0].mxu0
    %1010 = vdwg.mxu0
    %1011 = vmatprep.subr.bf16.mxu0 0
    %1012 = vmatpush1.bf16.msra.mxu0 %v938
    %1013 = vmatprep.subr.bf16.mxu0 0
    %1014 = vmatpush1.bf16.msra.mxu0 %v939
    %1015 = vmatprep.subr.bf16.mxu0 0
    %1016 = vmatpush1.bf16.msra.mxu0 %v940
    %1017 = vmatprep.subr.bf16.mxu0 0
    %1018 = vmatpush1.bf16.msra.mxu0 %v941
    %1019 = vmatprep.subr.bf16.mxu0 0
    %1020 = vmatpush1.bf16.msra.mxu0 %v942
    %1021 = vmatprep.subr.bf16.mxu0 0
    %1022 = vmatpush1.bf16.msra.mxu0 %v943
    %1023 = vmatprep.subr.bf16.mxu0 0
    %1024 = vmatpush1.bf16.msra.mxu0 %v944
    %1025 = vmatprep.subr.bf16.mxu0 0
    %1026 = vmatpush1.bf16.msra.mxu0 %v945
    %1027 = vmatprep.subr.bf16.mxu0 0
    %1028 = vmatpush1.bf16.msra.mxu0 0
    %1029 = vmatprep.subr.bf16.mxu0 0
    %1030 = vmatpush1.bf16.msra.mxu0 0
    %1031 = vmatprep.subr.bf16.mxu0 0
    %1032 = vmatpush1.bf16.msra.mxu0 0
    %1033 = vmatprep.subr.bf16.mxu0 0
    %1034 = vmatpush1.bf16.msra.mxu0 0
    %1035 = vmatprep.subr.bf16.mxu0 0
    %1036 = vmatpush1.bf16.msra.mxu0 0
    %1037 = vmatprep.subr.bf16.mxu0 0
    %1038 = vmatpush1.bf16.msra.mxu0 0
    %1039 = vmatprep.subr.bf16.mxu0 0
    %1040 = vmatpush1.bf16.msra.mxu0 0
    %1041 = vmatprep.subr.bf16.mxu0 0
    %1042 = vmatpush1.bf16.msra.mxu0 0
    %1043 = vmatprep.mubr.bf16.mxu0 0
    %1044 = vmatmul.mubr.bf16.gmra.mrb[0].mxu0 %v821
    %v1045 = vpop.f32.mrb[0].mxu0
    %v1046 = vadd.f32 %v1005, %v1045
    %v1047 = vpop.f32.mrb[0].mxu0
    %v1048 = vpop.f32.mrb[0].mxu0
    %v1049 = vadd.f32 %v1008, %v1048
    %v1050 = vpop.f32.mrb[0].mxu0
    %1051 = vdwg.mxu0
    %v1052 = vld [vmem:[#allocation2 + $0x1e0] sm:$0xf]
    %v1053 = vld [vmem:[#allocation2 + $0x1e4] sm:$0xf]
    %v1054 = vld [vmem:[#allocation2 + $0x1e8] sm:$0xf]
    %v1055 = vld [vmem:[#allocation2 + $0x1ec] sm:$0xf]
    %v1056 = vld [vmem:[#allocation2 + $0x1f0] sm:$0xf]
    %v1057 = vld [vmem:[#allocation2 + $0x1f4] sm:$0xf]
    %v1058 = vld [vmem:[#allocation4 + $0x10] sm:$0xff]
    %v1059 = vld [vmem:[#allocation4 + $0x18] sm:$0xff]
    %v1060 = vld [vmem:[#allocation4 + $0x40] sm:$0xff]
    %v1061 = vld [vmem:[#allocation4 + $0x48] sm:$0xff]
    %v1062 = vld [vmem:[#allocation4 + $0x50] sm:$0xff]
    %v1063 = vld [vmem:[#allocation4 + $0x58] sm:$0xff]
    %v1064 = vld [vmem:[#allocation4 + $0x60] sm:$0xff]
    %v1065 = vld [vmem:[#allocation4 + $0x68] sm:$0xff]
    %v1066 = vld [vmem:[#allocation4 + $0x70] sm:$0xff]
    %v1067 = vld [vmem:[#allocation4 + $0x78] sm:$0xff]
    %v1068 = vld [vmem:[#allocation4 + $0x80] sm:$0xff]
    %v1069 = vld [vmem:[#allocation4 + $0x88] sm:$0xff]
    %v1070 = vld [vmem:[#allocation4 + $0x90] sm:$0xff]
    %v1071 = vld [vmem:[#allocation4 + $0x9e] sm:$0x1]
    %v1072 = vmax.f32 %v1046, 0.0
    %v1073 = vmax.f32 %v1049, 0.0
    %v1074 = vpack.c.bf16 %v1073, %v1072
    %v1081 = vunpack.c.l.b16 %v1052
    %v1082 = vunpack.c.l.b16 %v1053
    %v1083 = vunpack.c.l.b16 %v1054
    %v1084 = vunpack.c.l.b16 %v1055
    %v1085 = vunpack.c.l.b16 %v1056
    %v1086 = vunpack.c.l.b16 %v1057
    %v1087 = vpack.c.b16 %v1082, %v1081
    %v1088 = vpack.c.b16 %v1084, %v1083
    %v1089 = vpack.c.b16 %v1086, %v1085
    %v1094 = vsel %vm99, %v1074, 0
    %1096 = vmatprep.subr.bf16.mxu0 0
    %1097 = vmatpush1.bf16.msra.mxu0 %v1087
    %1098 = vmatprep.subr.bf16.mxu0 0
    %1099 = vmatpush1.bf16.msra.mxu0 %v1088
    %1100 = vmatprep.subr.bf16.mxu0 0
    %1101 = vmatpush1.bf16.msra.mxu0 %v1089
    %1102 = vmatprep.subr.bf16.mxu0 0
    %1103 = vmatpush1.bf16.msra.mxu0 0
    %1104 = vmatprep.subr.bf16.mxu0 0
    %1105 = vmatpush1.bf16.msra.mxu0 0
    %1106 = vmatprep.subr.bf16.mxu0 0
    %1107 = vmatpush1.bf16.msra.mxu0 0
    %1108 = vmatprep.subr.bf16.mxu0 0
    %1109 = vmatpush1.bf16.msra.mxu0 0
    %1110 = vmatprep.subr.bf16.mxu0 0
    %1111 = vmatpush1.bf16.msra.mxu0 0
    %1112 = vmatprep.subr.bf16.mxu0 0
    %1113 = vmatpush1.bf16.msra.mxu0 0
    %1114 = vmatprep.subr.bf16.mxu0 0
    %1115 = vmatpush1.bf16.msra.mxu0 0
    %1116 = vmatprep.subr.bf16.mxu0 0
    %1117 = vmatpush1.bf16.msra.mxu0 0
    %1118 = vmatprep.subr.bf16.mxu0 0
    %1119 = vmatpush1.bf16.msra.mxu0 0
    %1120 = vmatprep.subr.bf16.mxu0 0
    %1121 = vmatpush1.bf16.msra.mxu0 0
    %1122 = vmatprep.subr.bf16.mxu0 0
    %1123 = vmatpush1.bf16.msra.mxu0 0
    %1124 = vmatprep.subr.bf16.mxu0 0
    %1125 = vmatpush1.bf16.msra.mxu0 0
    %1126 = vmatprep.subr.bf16.mxu0 0
    %1127 = vmatpush1.bf16.msra.mxu0 0
    %1128 = vmatprep.mubr.bf16.mxu0 0
    %1129 = vmatmul.mubr.bf16.gmra.mrb[0].mxu0 %v1094
    %v1130 = vpop.f32.mrb[0].mxu0
    %v1131 = vadd.f32 0.0, %v1130
    %v1132 = vpop.f32.mrb[0].mxu0
    %v1133 = vpop.f32.mrb[0].mxu0
    %v1134 = vadd.f32 0.0, %v1133
    %v1135 = vpop.f32.mrb[0].mxu0
    %1136 = vdwg.mxu0
    %v1137 = vmul.f32 %v1131, %v1058
    %v1138 = vmul.f32 %v1134, %v1059
    %vm1139 = vcmask 130048
    %v1141 = vsel %vm1139, %v1060, 0
    %1143 = vmatprep.subr.mxu0 0.0
    %1144 = vmatpush1.msra.mxu0 %v1137
    %1145 = vmatprep.subr.mxu0 0.0
    %1146 = vmatpush1.msra.mxu0 %v1138
    %1147 = vmatprep.subr.mxu0 0.0
    %1148 = vmatpush1.msra.mxu0 0.0
    %1149 = vmatprep.subr.mxu0 0.0
    %1150 = vmatpush1.msra.mxu0 0.0
    %1151 = vmatprep.subr.mxu0 0.0
    %1152 = vmatpush1.msra.mxu0 0.0
    %1153 = vmatprep.subr.mxu0 0.0
    %1154 = vmatpush1.msra.mxu0 0.0
    %1155 = vmatprep.subr.mxu0 0.0
    %1156 = vmatpush1.msra.mxu0 0.0
    %1157 = vmatprep.subr.mxu0 0.0
    %1158 = vmatpush1.msra.mxu0 0.0
    %1159 = vmatprep.subr.mxu0 0.0
    %1160 = vmatpush1.msra.mxu0 0.0
    %1161 = vmatprep.subr.mxu0 0.0
    %1162 = vmatpush1.msra.mxu0 0.0
    %1163 = vmatprep.subr.mxu0 0.0
    %1164 = vmatpush1.msra.mxu0 0.0
    %1165 = vmatprep.subr.mxu0 0.0
    %1166 = vmatpush1.msra.mxu0 0.0
    %1167 = vmatprep.subr.mxu0 0.0
    %1168 = vmatpush1.msra.mxu0 0.0
    %1169 = vmatprep.subr.mxu0 0.0
    %1170 = vmatpush1.msra.mxu0 0.0
    %1171 = vmatprep.subr.mxu0 0.0
    %1172 = vmatpush1.msra.mxu0 0.0
    %1173 = vmatprep.subr.mxu0 0.0
    %1174 = vmatpush1.msra.mxu0 0.0
    %1175 = vmatprep.subr.mxu0 0.0
    %1176 = vmatpush1.msra.mxu0 0.0
    %1177 = vmatprep.subr.mxu0 0.0
    %1178 = vmatpush1.msra.mxu0 0.0
    %1179 = vmatprep.subr.mxu0 0.0
    %1180 = vmatpush1.msra.mxu0 0.0
    %1181 = vmatprep.subr.mxu0 0.0
    %1182 = vmatpush1.msra.mxu0 0.0
    %1183 = vmatprep.subr.mxu0 0.0
    %1184 = vmatpush1.msra.mxu0 0.0
    %1185 = vmatprep.subr.mxu0 0.0
    %1186 = vmatpush1.msra.mxu0 0.0
    %1187 = vmatprep.subr.mxu0 0.0
    %1188 = vmatpush1.msra.mxu0 0.0
    %1189 = vmatprep.subr.mxu0 0.0
    %1190 = vmatpush1.msra.mxu0 0.0
    %1191 = vmatprep.subr.mxu0 0.0
    %1192 = vmatpush1.msra.mxu0 0.0
    %1193 = vmatprep.subr.mxu0 0.0
    %1194 = vmatpush1.msra.mxu0 0.0
    %1195 = vmatprep.subr.mxu0 0.0
    %1196 = vmatpush1.msra.mxu0 0.0
    %1197 = vmatprep.subr.mxu0 0.0
    %1198 = vmatpush1.msra.mxu0 0.0
    %1199 = vmatprep.subr.mxu0 0.0
    %1200 = vmatpush1.msra.mxu0 0.0
    %1201 = vmatprep.subr.mxu0 0.0
    %1202 = vmatpush1.msra.mxu0 0.0
    %1203 = vmatprep.subr.mxu0 0.0
    %1204 = vmatpush1.msra.mxu0 0.0
    %1205 = vmatprep.subr.mxu0 0.0
    %1206 = vmatpush1.msra.mxu0 0.0
    %1207 = vmatprep.mubr.f32.mxu0 0.0
    %1208 = vmatmul.mubr.f32.gmra.mrb[0].mxu0 %v1141
    %v1209 = vpop.f32.mrb[0].mxu0
    %v1210 = vadd.f32 0.0, %v1209
    %v1211 = vpop.f32.mrb[0].mxu0
    %1212 = vdwg.mxu0
    %v1213 = vlaneseq
    %v1214 = vshrl.u32 %v1213, 7
    %v1215 = vsub.s32 0, %v1214
    %v1216 = vrot.slane %v1071, %v1215
    %vm1217 = vcmask 654336
    %v1219 = vsel %vm1217, %v1210, 0
    %1221 = vmatprep.subr.mxu0 0.0
    %1222 = vmatpush1.msra.mxu0 %v1061
    %1223 = vmatprep.subr.mxu0 0.0
    %1224 = vmatpush1.msra.mxu0 %v1062
    %1225 = vmatprep.subr.mxu0 0.0
    %1226 = vmatpush1.msra.mxu0 %v1063
    %1227 = vmatprep.subr.mxu0 0.0
    %1228 = vmatpush1.msra.mxu0 %v1064
    %1229 = vmatprep.subr.mxu0 0.0
    %1230 = vmatpush1.msra.mxu0 %v1065
    %1231 = vmatprep.subr.mxu0 0.0
    %1232 = vmatpush1.msra.mxu0 %v1066
    %1233 = vmatprep.subr.mxu0 0.0
    %1234 = vmatpush1.msra.mxu0 %v1067
    %1235 = vmatprep.subr.mxu0 0.0
    %1236 = vmatpush1.msra.mxu0 %v1068
    %1237 = vmatprep.subr.mxu0 0.0
    %1238 = vmatpush1.msra.mxu0 %v1069
    %1239 = vmatprep.subr.mxu0 0.0
    %1240 = vmatpush1.msra.mxu0 %v1070
    %1241 = vmatprep.subr.mxu0 0.0
    %1242 = vmatpush1.msra.mxu0 0.0
    %1243 = vmatprep.subr.mxu0 0.0
    %1244 = vmatpush1.msra.mxu0 0.0
    %1245 = vmatprep.subr.mxu0 0.0
    %1246 = vmatpush1.msra.mxu0 0.0
    %1247 = vmatprep.subr.mxu0 0.0
    %1248 = vmatpush1.msra.mxu0 0.0
    %1249 = vmatprep.subr.mxu0 0.0
    %1250 = vmatpush1.msra.mxu0 0.0
    %1251 = vmatprep.subr.mxu0 0.0
    %1252 = vmatpush1.msra.mxu0 0.0
    %1253 = vmatprep.subr.mxu0 0.0
    %1254 = vmatpush1.msra.mxu0 0.0
    %1255 = vmatprep.subr.mxu0 0.0
    %1256 = vmatpush1.msra.mxu0 0.0
    %1257 = vmatprep.subr.mxu0 0.0
    %1258 = vmatpush1.msra.mxu0 0.0
    %1259 = vmatprep.subr.mxu0 0.0
    %1260 = vmatpush1.msra.mxu0 0.0
    %1261 = vmatprep.subr.mxu0 0.0
    %1262 = vmatpush1.msra.mxu0 0.0
    %1263 = vmatprep.subr.mxu0 0.0
    %1264 = vmatpush1.msra.mxu0 0.0
    %1265 = vmatprep.subr.mxu0 0.0
    %1266 = vmatpush1.msra.mxu0 0.0
    %1267 = vmatprep.subr.mxu0 0.0
    %1268 = vmatpush1.msra.mxu0 0.0
    %1269 = vmatprep.subr.mxu0 0.0
    %1270 = vmatpush1.msra.mxu0 0.0
    %1271 = vmatprep.subr.mxu0 0.0
    %1272 = vmatpush1.msra.mxu0 0.0
    %1273 = vmatprep.subr.mxu0 0.0
    %1274 = vmatpush1.msra.mxu0 0.0
    %1275 = vmatprep.subr.mxu0 0.0
    %1276 = vmatpush1.msra.mxu0 0.0
    %1277 = vmatprep.subr.mxu0 0.0
    %1278 = vmatpush1.msra.mxu0 0.0
    %1279 = vmatprep.subr.mxu0 0.0
    %1280 = vmatpush1.msra.mxu0 0.0
    %1281 = vmatprep.subr.mxu0 0.0
    %1282 = vmatpush1.msra.mxu0 0.0
    %1283 = vmatprep.subr.mxu0 0.0
    %1284 = vmatpush1.msra.mxu0 0.0
    %1285 = vmatprep.mubr.f32.mxu0 0.0
    %1286 = vmatmul.mubr.f32.gmra.mrb[0].mxu0 %v1219
    %v1287 = vpop.f32.mrb[0].mxu0
    %v1288 = vadd.f32 %v1216, %v1287
    %v1289 = vpop.f32.mrb[0].mxu0
    %1290 = vdwg.mxu0
    %v1291 = vmax.f32 %v1288, 0.0
    %v1292 = vadd.f32 %v1291, %v232
    %1293 = vst [vmem:[%s4] sm:$0xff] %v1292
    // Predicated region
    $region26: #{run_model.1} parent=1 // pred_check
      _
    $region27: #{run_model.1} parent=1 // pred_check_branch
      %1295 = sbr.rel (0) target = $region29
    $region28: #{run_model.1} parent=1 // pred_region
      _
    $region29: #{run_model.1} parent=1 // pred_fallthru
      _
    // Predicated region
    $region30: #{run_model.1} parent=1 // pred_check
      _
    $region31: #{run_model.1} parent=1 // pred_check_branch
      %1297 = sbr.rel (0) target = $region33
    $region32: #{run_model.1} parent=1 // pred_region
      _
    $region33: #{run_model.1} parent=1 // pred_fallthru
      _
    %1298 = vsyncpa [#allocation3], 1
    %1299 = vsyncpa [#allocation5], 1

</llo_original>
